<compile_context>
chip_gen: v7x
topology: tpu7x:2x2x1
jax: 0.10.0
libtpu: 0.0.40
codegen_flags: <defaults>
</compile_context>

<pallas_src>
import functools

import jax
import jax.numpy as jnp
from jax.experimental import pallas as pl
from jax.experimental.pallas import tpu as pltpu

VMEM_LIMIT = 48 * 1024 * 1024    # above every default scoped limit, below v7x's 64 MiB
FUSED_MAX_NODES = 2048           # adjacency + activations comfortably VMEM-resident


def _round_up(x, m):
    return (x + m - 1) // m * m


# -----------------------------------------------------------------------------
# Fused path: all three GCN layers in one pallas_call, adjacency read once.
# -----------------------------------------------------------------------------
def gcn_fused_kernel(mask_ref, d_ref, x_ref, w1_ref, b1_ref, w2_ref, b2_ref,
                     w3_ref, b3_ref, o_ref):
    mask = mask_ref[...]        # (n_pad, n_pad) bf16 0/1 mask, VMEM resident
    d = d_ref[...]              # (n_pad, 1)     f32  D^-1/2 (0 on padded rows)

    def layer(h, w_ref_, b_ref_, relu):
        # A_hat @ H = d * (mask @ (d * H)); aggregate first, tiny W matmul last.
        hs = (h.astype(jnp.float32) * d).astype(jnp.bfloat16)
        agg = jnp.dot(mask, hs, preferred_element_type=jnp.float32) * d
        z = jnp.dot(agg, w_ref_[...], preferred_element_type=jnp.float32) + b_ref_[...]
        if relu:
            z = jnp.maximum(z, 0.0)
        return z

    h1 = layer(x_ref[...], w1_ref, b1_ref, True).astype(jnp.bfloat16)
    h2 = layer(h1, w2_ref, b2_ref, True).astype(jnp.bfloat16)
    o_ref[...] = layer(h2, w3_ref, b3_ref, False)


def gcn_fused(mask_bf16, d, x, w1, b1, w2, b2, w3, b3):
    n_pad = mask_bf16.shape[0]
    c_pad = w3.shape[1]
    vspec = pl.BlockSpec(memory_space=pltpu.MemorySpace.VMEM)
    return pl.pallas_call(
        gcn_fused_kernel,
        out_shape=jax.ShapeDtypeStruct((n_pad, c_pad), jnp.float32),
        in_specs=[vspec] * 9,
        out_specs=vspec,
        compiler_params=pltpu.CompilerParams(vmem_limit_bytes=VMEM_LIMIT),
    )(mask_bf16, d, x, w1, b1, w2, b2, w3, b3)


# -----------------------------------------------------------------------------
# Tiled path: one GCN layer, 2-D grid (parallel row blocks x arbitrary k).
# -----------------------------------------------------------------------------
def gcn_layer_kernel(mask_ref, h_ref, d_row_ref, d_col_ref, w_ref, b_ref,
                     o_ref, acc_ref, *, tile_k, apply_relu):
    k = pl.program_id(1)

    @pl.when(k == 0)
    def _():
        acc_ref[...] = jnp.zeros_like(acc_ref)

    # k-th row block of the resident H, scaled by d (exact normalization fold).
    koff = pl.multiple_of(k * tile_k, tile_k)
    h_blk = h_ref[pl.ds(koff, tile_k), :].astype(jnp.float32)
    h_scaled = (h_blk * d_col_ref[...]).astype(jnp.bfloat16)

    # int8 0/1 adjacency tile -> bf16 (VPU upcast; kernel is HBM-bound).
    mask = mask_ref[...].astype(jnp.float32).astype(jnp.bfloat16)

    acc_ref[...] += jnp.dot(mask, h_scaled, preferred_element_type=jnp.float32)

    @pl.when(k == pl.num_programs(1) - 1)
    def _():
        agg = acc_ref[...] * d_row_ref[...]
        z = jnp.dot(agg, w_ref[...], preferred_element_type=jnp.float32) + b_ref[...]
        if apply_relu:
            z = jnp.maximum(z, 0.0)
        o_ref[...] = z.astype(o_ref.dtype)


def gcn_layer(mask_i8, h, d, w, b, *, apply_relu, out_dtype, tile):
    n_pad = mask_i8.shape[0]
    fin = h.shape[1]
    fout = w.shape[1]
    kernel = functools.partial(gcn_layer_kernel, tile_k=tile, apply_relu=apply_relu)
    return pl.pallas_call(
        kernel,
        out_shape=jax.ShapeDtypeStruct((n_pad, fout), out_dtype),
        grid=(n_pad // tile, n_pad // tile),
        in_specs=[
            pl.BlockSpec((tile, tile), lambda i, k: (i, k)),   # int8 adjacency tile
            pl.BlockSpec((n_pad, fin), lambda i, k: (0, 0)),   # H: fully VMEM resident
            pl.BlockSpec((tile, 1), lambda i, k: (i, 0)),      # d for output rows
            pl.BlockSpec((tile, 1), lambda i, k: (k, 0)),      # d for reduction rows
            pl.BlockSpec((fin, fout), lambda i, k: (0, 0)),    # resident W
            pl.BlockSpec((1, fout), lambda i, k: (0, 0)),      # resident bias
        ],
        out_specs=pl.BlockSpec((tile, fout), lambda i, k: (i, 0)),
        scratch_shapes=[pltpu.VMEM((tile, fin), jnp.float32)],
        compiler_params=pltpu.CompilerParams(
            dimension_semantics=("parallel", "arbitrary"),
            vmem_limit_bytes=VMEM_LIMIT),
    )(mask_i8, h, d, d, w, b)


# -----------------------------------------------------------------------------
# Forward wrapper
# -----------------------------------------------------------------------------
def job_market_gnn_forward(x, edge_index, batch, params, *, force_tiled=False):
    # `batch` is accepted (PyTorch signature) but unused: the reference forward
    # returns per-node logits with no global pooling.
    del batch
    n, f = x.shape
    h_dim = params["w1"].shape[1]
    c = params["w3"].shape[1]

    # Adjacency tile: bigger tiles for bigger graphs (fewer grid steps and
    # fewer accumulator read-modify-write passes).
    if n >= 4096:
        tile = 1024
    elif n >= 1024:
        tile = 512
    elif n > 256:
        tile = 256
    else:
        tile = 128
    n_pad = _round_up(n, tile)

    f_pad = _round_up(f, 128)
    h_pad = _round_up(h_dim, 128)
    c_pad = _round_up(c, 128)

    use_fused = (not force_tiled) and n_pad <= FUSED_MAX_NODES

    # Exact GCN normalization data: 0/1 mask of (A + I) built directly at its
    # final dtype/padded size (no f32 NxN temp), plus d = D^-1/2.  The fused
    # path keeps the mask bf16 (read once, still exact); the tiled path uses
    # int8 to halve the streamed adjacency bytes.
    mask_dtype = jnp.bfloat16 if use_fused else jnp.int8
    idx = jnp.arange(n)
    mask = jnp.zeros((n_pad, n_pad), mask_dtype)
    mask = mask.at[edge_index[0], edge_index[1]].set(1)
    mask = mask.at[idx, idx].set(1)                            # self loops
    deg = jnp.count_nonzero(mask, axis=1).astype(jnp.float32)  # 0 on padded rows
    d = jnp.where(deg > 0, jax.lax.rsqrt(deg), 0.0)[:, None]   # (n_pad, 1) f32

    def pad_w(w, rows, cols):
        return jnp.zeros((rows, cols), jnp.float32).at[:w.shape[0], :w.shape[1]].set(w)

    def pad_b(b, cols):
        return jnp.zeros((1, cols), jnp.float32).at[0, :b.shape[0]].set(b)

    # If the raw feature width exceeds the hidden 128-lane padding, pre-apply
    # W1 (tiny matmul) so the memory-bound aggregation and its f32 accumulator
    # stay at h_pad lanes: A @ (X W1) instead of (A @ X) W1.
    if f_pad > h_pad:
        h0 = x.astype(jnp.float32) @ params["w1"]              # (n, h_dim), cheap
        x_p = jnp.zeros((n_pad, h_pad), jnp.bfloat16).at[:n, :h_dim].set(
            h0.astype(jnp.bfloat16))
        w1_p = jnp.eye(h_pad, dtype=jnp.float32)               # exact pass-through
    else:
        x_p = jnp.zeros((n_pad, f_pad), jnp.bfloat16).at[:n, :f].set(
            x.astype(jnp.bfloat16))
        w1_p = pad_w(params["w1"], f_pad, h_pad)
    b1_p = pad_b(params["b1"], h_pad)
    w2_p, b2_p = pad_w(params["w2"], h_pad, h_pad), pad_b(params["b2"], h_pad)
    w3_p, b3_p = pad_w(params["w3"], h_pad, c_pad), pad_b(params["b3"], c_pad)

    # TODO(synk): torch.dropout(p=0.2) after conv1's relu is omitted
    # (inference-mode identity; torch's RNG stream is not reproducible here).
    if use_fused:
        out = gcn_fused(mask, d, x_p, w1_p, b1_p, w2_p, b2_p, w3_p, b3_p)
    else:
        h1 = gcn_layer(mask, x_p, d, w1_p, b1_p, apply_relu=True,
                       out_dtype=jnp.bfloat16, tile=tile)
        h2 = gcn_layer(mask, h1, d, w2_p, b2_p, apply_relu=True,
                       out_dtype=jnp.bfloat16, tile=tile)
        out = gcn_layer(mask, h2, d, w3_p, b3_p, apply_relu=False,
                        out_dtype=jnp.float32, tile=tile)
    return out[:n, :c]


# -----------------------------------------------------------------------------
# Pure-JAX reference (same bf16-intermediate precision choices) + params init
# -----------------------------------------------------------------------------
def reference_forward(x, edge_index, params):
    n = x.shape[0]
    idx = jnp.arange(n)
    mask = jnp.zeros((n, n), jnp.float32)
    mask = mask.at[edge_index[0], edge_index[1]].set(1.0)
    mask = mask.at[idx, idx].set(1.0)
    deg = mask.sum(axis=1)
    d = jnp.where(deg > 0, jax.lax.rsqrt(deg), 0.0)[:, None]
    m = mask.astype(jnp.bfloat16)

    def layer(h, w, b, relu):
        hs = (h.astype(jnp.float32) * d).astype(jnp.bfloat16)
        agg = jnp.dot(m, hs, preferred_element_type=jnp.float32) * d
        z = jnp.dot(agg, w, preferred_element_type=jnp.float32) + b
        return jnp.maximum(z, 0.0) if relu else z

    h1 = layer(x.astype(jnp.bfloat16), params["w1"], params["b1"], True).astype(jnp.bfloat16)
    h2 = layer(h1, params["w2"], params["b2"], True).astype(jnp.bfloat16)
    return layer(h2, params["w3"], params["b3"], False)


def init_params(key, num_features, hidden_channels, num_classes):
    ks = jax.random.split(key, 3)

    def glorot(k, fan_in, fan_out):
        lim = jnp.sqrt(6.0 / (fan_in + fan_out))
        return jax.random.uniform(k, (fan_in, fan_out), jnp.float32, -lim, lim)

    return {
        "w1": glorot(ks[0], num_features, hidden_channels),
        "b1": jnp.zeros((hidden_channels,), jnp.float32),
        "w2": glorot(ks[1], hidden_channels, hidden_channels),
        "b2": jnp.zeros((hidden_channels,), jnp.float32),
        "w3": glorot(ks[2], hidden_channels, num_classes),
        "b3": jnp.zeros((num_classes,), jnp.float32),
    }


if __name__ == "__main__":
    key = jax.random.PRNGKey(0)
    F, H, C = 16, 32, 8
    params = init_params(jax.random.fold_in(key, 0), F, H, C)

    def make_graph(k, n, e):
        kx, ks, kd = jax.random.split(k, 3)
        xg = jax.random.normal(kx, (n, F), jnp.float32)
        src = jax.random.randint(ks, (e,), 0, n)
        dst = jax.random.randint(kd, (e,), 0, n)
        return xg, jnp.stack([src, dst], axis=0), jnp.zeros((n,), jnp.int32)

    # Small graph -> fused single-call path (adjacency DMA'd from HBM once).
    x1, ei1, bat1 = make_graph(jax.random.fold_in(key, 1), 16, 40)
    out1 = job_market_gnn_forward(x1, ei1, bat1, params)
    jax.block_until_ready(out1)
    assert out1.shape == (16, C) and out1.dtype == jnp.float32
    ref1 = reference_forward(x1, ei1, params)
    assert jnp.allclose(out1, ref1, atol=0.1, rtol=0.1), \
        float(jnp.max(jnp.abs(out1 - ref1)))

    # Larger graph forced onto the tiled path (2x2 grid, int8 adjacency,
    # resident H, f32 accumulator with pl.when init/finalize).
    x2, ei2, bat2 = make_graph(jax.random.fold_in(key, 2), 300, 1200)
    out2 = job_market_gnn_forward(x2, ei2, bat2, params, force_tiled=True)
    jax.block_until_ready(out2)
    assert out2.shape == (300, C) and out2.dtype == jnp.float32
    ref2 = reference_forward(x2, ei2, params)
    assert jnp.allclose(out2, ref2, atol=0.1, rtol=0.1), \
        float(jnp.max(jnp.abs(out2 - ref2)))

    print("KERNEL_OK")
</pallas_src>

<mosaic_0001>
module attributes {stable_mosaic.version = 11 : i64} {
  func.func @gcn_fused_kernel(%arg0: memref<128x128xbf16, #tpu.memory_space<vmem>>, %arg1: memref<128x1xf32, #tpu.memory_space<vmem>>, %arg2: memref<128x128xbf16, #tpu.memory_space<vmem>>, %arg3: memref<128x128xf32, #tpu.memory_space<vmem>>, %arg4: memref<1x128xf32, #tpu.memory_space<vmem>>, %arg5: memref<128x128xf32, #tpu.memory_space<vmem>>, %arg6: memref<1x128xf32, #tpu.memory_space<vmem>>, %arg7: memref<128x128xf32, #tpu.memory_space<vmem>>, %arg8: memref<1x128xf32, #tpu.memory_space<vmem>>, %arg9: memref<128x128xf32, #tpu.memory_space<vmem>>) attributes {dimension_semantics = [], scalar_prefetch = 0 : i64, scratch_operands = 0 : i64, tpu.core_type = #tpu.core_type<tc>} {
    %c0 = arith.constant 0 : index
    %c0_0 = arith.constant 0 : index
    %0 = vector.load %arg0[%c0, %c0_0] : memref<128x128xbf16, #tpu.memory_space<vmem>>, vector<128x128xbf16>
    %c0_1 = arith.constant 0 : index
    %c0_2 = arith.constant 0 : index
    %1 = vector.load %arg1[%c0_1, %c0_2] : memref<128x1xf32, #tpu.memory_space<vmem>>, vector<128x1xf32>
    %c0_3 = arith.constant 0 : index
    %c0_4 = arith.constant 0 : index
    %2 = vector.load %arg2[%c0_3, %c0_4] : memref<128x128xbf16, #tpu.memory_space<vmem>>, vector<128x128xbf16>
    %3 = arith.extf %2 : vector<128x128xbf16> to vector<128x128xf32>
    %4 = vector.broadcast %1 : vector<128x1xf32> to vector<128x128xf32>
    %5 = arith.mulf %3, %4 : vector<128x128xf32>
    %6 = arith.truncf %5 : vector<128x128xf32> to vector<128x128xbf16>
    %cst = arith.constant dense<0.000000e+00> : vector<128x128xf32>
    %7 = tpu.matmul %0, %6, %cst {dimension_numbers = #tpu.dot_dimension_numbers<[1], [0], [0], [1], [0, 0, 1, 1], [], []>} : vector<128x128xbf16>, vector<128x128xbf16>, vector<128x128xf32> -> vector<128x128xf32>
    %8 = vector.broadcast %1 : vector<128x1xf32> to vector<128x128xf32>
    %9 = arith.mulf %7, %8 : vector<128x128xf32>
    %c0_5 = arith.constant 0 : index
    %c0_6 = arith.constant 0 : index
    %10 = vector.load %arg3[%c0_5, %c0_6] : memref<128x128xf32, #tpu.memory_space<vmem>>, vector<128x128xf32>
    %cst_7 = arith.constant dense<0.000000e+00> : vector<128x128xf32>
    %11 = tpu.matmul %9, %10, %cst_7 {dimension_numbers = #tpu.dot_dimension_numbers<[1], [0], [0], [1], [0, 0, 1, 1], [], []>} : vector<128x128xf32>, vector<128x128xf32>, vector<128x128xf32> -> vector<128x128xf32>
    %c0_8 = arith.constant 0 : index
    %c0_9 = arith.constant 0 : index
    %12 = vector.load %arg4[%c0_8, %c0_9] : memref<1x128xf32, #tpu.memory_space<vmem>>, vector<1x128xf32>
    %13 = vector.broadcast %12 : vector<1x128xf32> to vector<128x128xf32>
    %14 = arith.addf %11, %13 : vector<128x128xf32>
    %cst_10 = arith.constant 0.000000e+00 : f32
    %15 = vector.broadcast %cst_10 : f32 to vector<128x128xf32>
    %16 = arith.maximumf %14, %15 : vector<128x128xf32>
    %17 = arith.truncf %16 : vector<128x128xf32> to vector<128x128xbf16>
    %18 = arith.extf %17 : vector<128x128xbf16> to vector<128x128xf32>
    %19 = vector.broadcast %1 : vector<128x1xf32> to vector<128x128xf32>
    %20 = arith.mulf %18, %19 : vector<128x128xf32>
    %21 = arith.truncf %20 : vector<128x128xf32> to vector<128x128xbf16>
    %cst_11 = arith.constant dense<0.000000e+00> : vector<128x128xf32>
    %22 = tpu.matmul %0, %21, %cst_11 {dimension_numbers = #tpu.dot_dimension_numbers<[1], [0], [0], [1], [0, 0, 1, 1], [], []>} : vector<128x128xbf16>, vector<128x128xbf16>, vector<128x128xf32> -> vector<128x128xf32>
    %23 = vector.broadcast %1 : vector<128x1xf32> to vector<128x128xf32>
    %24 = arith.mulf %22, %23 : vector<128x128xf32>
    %c0_12 = arith.constant 0 : index
    %c0_13 = arith.constant 0 : index
    %25 = vector.load %arg5[%c0_12, %c0_13] : memref<128x128xf32, #tpu.memory_space<vmem>>, vector<128x128xf32>
    %cst_14 = arith.constant dense<0.000000e+00> : vector<128x128xf32>
    %26 = tpu.matmul %24, %25, %cst_14 {dimension_numbers = #tpu.dot_dimension_numbers<[1], [0], [0], [1], [0, 0, 1, 1], [], []>} : vector<128x128xf32>, vector<128x128xf32>, vector<128x128xf32> -> vector<128x128xf32>
    %c0_15 = arith.constant 0 : index
    %c0_16 = arith.constant 0 : index
    %27 = vector.load %arg6[%c0_15, %c0_16] : memref<1x128xf32, #tpu.memory_space<vmem>>, vector<1x128xf32>
    %28 = vector.broadcast %27 : vector<1x128xf32> to vector<128x128xf32>
    %29 = arith.addf %26, %28 : vector<128x128xf32>
    %cst_17 = arith.constant 0.000000e+00 : f32
    %30 = vector.broadcast %cst_17 : f32 to vector<128x128xf32>
    %31 = arith.maximumf %29, %30 : vector<128x128xf32>
    %32 = arith.truncf %31 : vector<128x128xf32> to vector<128x128xbf16>
    %33 = arith.extf %32 : vector<128x128xbf16> to vector<128x128xf32>
    %34 = vector.broadcast %1 : vector<128x1xf32> to vector<128x128xf32>
    %35 = arith.mulf %33, %34 : vector<128x128xf32>
    %36 = arith.truncf %35 : vector<128x128xf32> to vector<128x128xbf16>
    %cst_18 = arith.constant dense<0.000000e+00> : vector<128x128xf32>
    %37 = tpu.matmul %0, %36, %cst_18 {dimension_numbers = #tpu.dot_dimension_numbers<[1], [0], [0], [1], [0, 0, 1, 1], [], []>} : vector<128x128xbf16>, vector<128x128xbf16>, vector<128x128xf32> -> vector<128x128xf32>
    %38 = vector.broadcast %1 : vector<128x1xf32> to vector<128x128xf32>
    %39 = arith.mulf %37, %38 : vector<128x128xf32>
    %c0_19 = arith.constant 0 : index
    %c0_20 = arith.constant 0 : index
    %40 = vector.load %arg7[%c0_19, %c0_20] : memref<128x128xf32, #tpu.memory_space<vmem>>, vector<128x128xf32>
    %cst_21 = arith.constant dense<0.000000e+00> : vector<128x128xf32>
    %41 = tpu.matmul %39, %40, %cst_21 {dimension_numbers = #tpu.dot_dimension_numbers<[1], [0], [0], [1], [0, 0, 1, 1], [], []>} : vector<128x128xf32>, vector<128x128xf32>, vector<128x128xf32> -> vector<128x128xf32>
    %c0_22 = arith.constant 0 : index
    %c0_23 = arith.constant 0 : index
    %42 = vector.load %arg8[%c0_22, %c0_23] : memref<1x128xf32, #tpu.memory_space<vmem>>, vector<1x128xf32>
    %43 = vector.broadcast %42 : vector<1x128xf32> to vector<128x128xf32>
    %44 = arith.addf %41, %43 : vector<128x128xf32>
    %c0_24 = arith.constant 0 : index
    %c0_25 = arith.constant 0 : index
    %45 = vector.load %arg9[%c0_24, %c0_25] : memref<128x128xf32, #tpu.memory_space<vmem>>, vector<128x128xf32>
    tpu.vector_store %arg9[%c0_24, %c0_25], %44 {strides = array<i32>} : memref<128x128xf32, #tpu.memory_space<vmem>>, vector<128x128xf32>,
    return
  }
}

</mosaic_0001>

<llo_original>
// kernel: tpu_custom_call.1
$region0: #{tpu_custom_call.1}
  #allocation0 [shape = 'u32[]', space=smem, size = 0x4, offset = 0x4, fixed_abs, tag = 'smem constant byte address 0x4 - core index']
  #allocation1 [shape = 'u32[144,128]{1,0:T(1,128)}', space=vmem, size = 0x12000, scoped, tag = 'internal scratch']
  %s0 = inlined_call_operand.hbm [shape: bf16[128,128], index: 0, kind: input, shape index: {}]
  %s1 = inlined_call_operand.vmem [shape: f32[128,1], index: 1, kind: input, shape index: {}]
  %s2 = inlined_call_operand.hbm [shape: bf16[128,128], index: 2, kind: input, shape index: {}]
  %s3 = inlined_call_operand.vmem [shape: f32[128,128], index: 3, kind: input, shape index: {}]
  %s4 = inlined_call_operand.vmem [shape: f32[1,128], index: 4, kind: input, shape index: {}]
  %s5 = inlined_call_operand.hbm [shape: f32[128,128], index: 5, kind: input, shape index: {}]
  %s6 = inlined_call_operand.vmem [shape: f32[1,128], index: 6, kind: input, shape index: {}]
  %s7 = inlined_call_operand.hbm [shape: f32[128,128], index: 7, kind: input, shape index: {}]
  %s8 = inlined_call_operand.vmem [shape: f32[1,128], index: 8, kind: input, shape index: {}]
  %s9 = inlined_call_operand.hbm [shape: f32[128,128], index: 9, kind: output, shape index: {}]
  %s10 = sld [smem:[#allocation0]]
  $region62: #{tpu_custom_call.1} parent=0
    _
  %s12 = ssub.s32 1, %s10
  %s13 = scalar_select 0, %s12, %s10
  $region1: #{tpu_custom_call.1} parent=0
    #allocation2 [shape = 'u8[32768]{0}', space=vmem, size = 0x8000, scoped, tag = 'input window, operand 0, single buffered']
    #allocation3 [shape = 's32[1]{0}', space=sflag, size = 0x4, scoped, tag = 'scoped memory for tpu_custom_call.1']
    #allocation4 [shape = 's32[1]{0}', space=sflag, size = 0x4, scoped, tag = 'scoped memory for tpu_custom_call.1']
    #allocation5 [shape = 'u8[32768]{0}', space=vmem, size = 0x8000, scoped, tag = 'input window, operand 2, single buffered']
    #allocation6 [shape = 's32[1]{0}', space=sflag, size = 0x4, scoped, tag = 'scoped memory for tpu_custom_call.1']
    #allocation7 [shape = 'u8[65536]{0}', space=vmem, size = 0x10000, scoped, tag = 'input window, operand 5, single buffered']
    #allocation8 [shape = 'u8[65536]{0}', space=vmem, size = 0x10000, scoped, tag = 'input window, operand 7, single buffered']
    #allocation9 [shape = 's32[1]{0}', space=sflag, size = 0x4, scoped, tag = 'scoped memory for tpu_custom_call.1']
    #allocation10 [shape = 'u8[65536]{0}', space=vmem, size = 0x10000, scoped, tag = 'output window, operand 0, single buffered']
    %14 = vsyncpa [#allocation3], 0
    %15 = vsyncpa [#allocation6], 0
    %16 = vsyncpa [#allocation9], 0
    %17 = vsyncpa [#allocation4], 0
    // Predicated region
    $region2: #{tpu_custom_call.1} parent=1 // pred_check
      _
    $region3: #{tpu_custom_call.1} parent=1 // pred_check_branch
      %19 = sbr.rel (0) target = $region5
    $region4: #{tpu_custom_call.1} parent=1 // pred_region
      %s21 = ssub.s32 1024, 1024
      %22 = vsyncadd [#allocation3], %s21
      %s23 = sshll.u32 [#allocation2], 4
      %s24 = int_to_ptr.vmem [resolvable:$true] %s23
      %29 = dma.hbm_to_vmem [thread:$0]  %s0, 1024, %s24, [#allocation3], 64, 64, 4
    $region5: #{tpu_custom_call.1} parent=1 // pred_fallthru
      _
    // Predicated region
    $region6: #{tpu_custom_call.1} parent=1 // pred_check
      _
    $region7: #{tpu_custom_call.1} parent=1 // pred_check_branch
      %31 = sbr.rel (0) target = $region9
    $region8: #{tpu_custom_call.1} parent=1 // pred_region
      _
    $region9: #{tpu_custom_call.1} parent=1 // pred_fallthru
      _
    // Predicated region
    $region10: #{tpu_custom_call.1} parent=1 // pred_check
      _
    $region11: #{tpu_custom_call.1} parent=1 // pred_check_branch
      %33 = sbr.rel (0) target = $region13
    $region12: #{tpu_custom_call.1} parent=1 // pred_region
      %s35 = ssub.s32 1024, 1024
      %36 = vsyncadd [#allocation6], %s35
      %s37 = sshll.u32 [#allocation5], 4
      %s38 = int_to_ptr.vmem [resolvable:$true] %s37
      %43 = dma.hbm_to_vmem [thread:$0]  %s2, 1024, %s38, [#allocation6], 64, 64, 4
    $region13: #{tpu_custom_call.1} parent=1 // pred_fallthru
      _
    // Predicated region
    $region14: #{tpu_custom_call.1} parent=1 // pred_check
      _
    $region15: #{tpu_custom_call.1} parent=1 // pred_check_branch
      %45 = sbr.rel (0) target = $region17
    $region16: #{tpu_custom_call.1} parent=1 // pred_region
      _
    $region17: #{tpu_custom_call.1} parent=1 // pred_fallthru
      _
    // Predicated region
    $region18: #{tpu_custom_call.1} parent=1 // pred_check
      _
    $region19: #{tpu_custom_call.1} parent=1 // pred_check_branch
      %47 = sbr.rel (0) target = $region21
    $region20: #{tpu_custom_call.1} parent=1 // pred_region
      _
    $region21: #{tpu_custom_call.1} parent=1 // pred_fallthru
      _
    // Predicated region
    $region22: #{tpu_custom_call.1} parent=1 // pred_check
      _
    $region23: #{tpu_custom_call.1} parent=1 // pred_check_branch
      %49 = sbr.rel (0) target = $region25
    $region24: #{tpu_custom_call.1} parent=1 // pred_region
      %s51 = ssub.s32 2048, 2048
      %52 = vsyncadd [#allocation6], %s51
      %s53 = sshll.u32 [#allocation7], 4
      %s54 = int_to_ptr.vmem [resolvable:$true] %s53
      %59 = dma.hbm_to_vmem [thread:$0]  %s5, 2048, %s54, [#allocation6], 128, 128, 8
    $region25: #{tpu_custom_call.1} parent=1 // pred_fallthru
      _
    // Predicated region
    $region26: #{tpu_custom_call.1} parent=1 // pred_check
      _
    $region27: #{tpu_custom_call.1} parent=1 // pred_check_branch
      %61 = sbr.rel (0) target = $region29
    $region28: #{tpu_custom_call.1} parent=1 // pred_region
      _
    $region29: #{tpu_custom_call.1} parent=1 // pred_fallthru
      _
    // Predicated region
    $region30: #{tpu_custom_call.1} parent=1 // pred_check
      _
    $region31: #{tpu_custom_call.1} parent=1 // pred_check_branch
      %63 = sbr.rel (0) target = $region33
    $region32: #{tpu_custom_call.1} parent=1 // pred_region
      %s65 = ssub.s32 2048, 2048
      %66 = vsyncadd [#allocation9], %s65
      %s67 = sshll.u32 [#allocation8], 4
      %s68 = int_to_ptr.vmem [resolvable:$true] %s67
      %73 = dma.hbm_to_vmem [thread:$0]  %s7, 2048, %s68, [#allocation9], 128, 128, 8
    $region33: #{tpu_custom_call.1} parent=1 // pred_fallthru
      _
    // Predicated region
    $region34: #{tpu_custom_call.1} parent=1 // pred_check
      _
    $region35: #{tpu_custom_call.1} parent=1 // pred_check_branch
      %75 = sbr.rel (0) target = $region37
    $region36: #{tpu_custom_call.1} parent=1 // pred_region
      _
    $region37: #{tpu_custom_call.1} parent=1 // pred_fallthru
      _
    // Predicated region
    $region38: #{tpu_custom_call.1} parent=1 // pred_check
      _
    $region39: #{tpu_custom_call.1} parent=1 // pred_check_branch
      %77 = sbr.rel (0) target = $region41
    $region40: #{tpu_custom_call.1} parent=1 // pred_region
      %78 = dma.done [#allocation3], 1024
    $region41: #{tpu_custom_call.1} parent=1 // pred_fallthru
      _
    // Predicated region
    $region42: #{tpu_custom_call.1} parent=1 // pred_check
      _
    $region43: #{tpu_custom_call.1} parent=1 // pred_check_branch
      %80 = sbr.rel (0) target = $region45
    $region44: #{tpu_custom_call.1} parent=1 // pred_region
      %81 = dma.done [#allocation6], 1024
    $region45: #{tpu_custom_call.1} parent=1 // pred_fallthru
      _
    // Predicated region
    $region46: #{tpu_custom_call.1} parent=1 // pred_check
      _
    $region47: #{tpu_custom_call.1} parent=1 // pred_check_branch
      %83 = sbr.rel (0) target = $region49
    $region48: #{tpu_custom_call.1} parent=1 // pred_region
      %84 = dma.done [#allocation6], 2048
    $region49: #{tpu_custom_call.1} parent=1 // pred_fallthru
      _
    // Predicated region
    $region50: #{tpu_custom_call.1} parent=1 // pred_check
      _
    $region51: #{tpu_custom_call.1} parent=1 // pred_check_branch
      %86 = sbr.rel (0) target = $region53
    $region52: #{tpu_custom_call.1} parent=1 // pred_region
      %87 = dma.done [#allocation9], 2048
    $region53: #{tpu_custom_call.1} parent=1 // pred_fallthru
      _
    %v89 = vld [vmem:[#allocation2] sm:$0xf]
    %v90 = vld [vmem:[#allocation2 + $0x4] sm:$0xf]
    %v91 = vld [vmem:[#allocation2 + $0x8] sm:$0xf]
    %v92 = vld [vmem:[#allocation2 + $0xc] sm:$0xf]
    %v93 = vld [vmem:[#allocation2 + $0x10] sm:$0xf]
    %v94 = vld [vmem:[#allocation2 + $0x14] sm:$0xf]
    %v95 = vld [vmem:[#allocation2 + $0x18] sm:$0xf]
    %v96 = vld [vmem:[#allocation2 + $0x1c] sm:$0xf]
    %v97 = vld [vmem:[#allocation2 + $0x20] sm:$0xf]
    %v98 = vld [vmem:[#allocation2 + $0x24] sm:$0xf]
    %v99 = vld [vmem:[#allocation2 + $0x28] sm:$0xf]
    %v100 = vld [vmem:[#allocation2 + $0x2c] sm:$0xf]
    %v101 = vld [vmem:[#allocation2 + $0x30] sm:$0xf]
    %v102 = vld [vmem:[#allocation2 + $0x34] sm:$0xf]
    %v103 = vld [vmem:[#allocation2 + $0x38] sm:$0xf]
    %v104 = vld [vmem:[#allocation2 + $0x3c] sm:$0xf]
    %v105 = vld [vmem:[%s1] sm:$0xff]
    %v106 = vld [vmem:[%s1 + $0x8] sm:$0xff]
    %v107 = vld [vmem:[%s1 + $0x10] sm:$0xff]
    %v108 = vld [vmem:[%s1 + $0x18] sm:$0xff]
    %v109 = vld [vmem:[%s1 + $0x20] sm:$0xff]
    %v110 = vld [vmem:[%s1 + $0x28] sm:$0xff]
    %v111 = vld [vmem:[%s1 + $0x30] sm:$0xff]
    %v112 = vld [vmem:[%s1 + $0x38] sm:$0xff]
    %v113 = vld [vmem:[%s1 + $0x40] sm:$0xff]
    %v114 = vld [vmem:[%s1 + $0x48] sm:$0xff]
    %v115 = vld [vmem:[%s1 + $0x50] sm:$0xff]
    %v116 = vld [vmem:[%s1 + $0x58] sm:$0xff]
    %v117 = vld [vmem:[%s1 + $0x60] sm:$0xff]
    %v118 = vld [vmem:[%s1 + $0x68] sm:$0xff]
    %v119 = vld [vmem:[%s1 + $0x70] sm:$0xff]
    %v120 = vld [vmem:[%s1 + $0x78] sm:$0xff]
    %v121 = vld [vmem:[#allocation5] sm:$0xf]
    %v122 = vld [vmem:[#allocation5 + $0x4] sm:$0xf]
    %v123 = vld [vmem:[#allocation5 + $0x8] sm:$0xf]
    %v124 = vld [vmem:[#allocation5 + $0xc] sm:$0xf]
    %v125 = vld [vmem:[#allocation5 + $0x10] sm:$0xf]
    %v126 = vld [vmem:[#allocation5 + $0x14] sm:$0xf]
    %v127 = vld [vmem:[#allocation5 + $0x18] sm:$0xf]
    %v128 = vld [vmem:[#allocation5 + $0x1c] sm:$0xf]
    %v129 = vld [vmem:[#allocation5 + $0x20] sm:$0xf]
    %v130 = vld [vmem:[#allocation5 + $0x24] sm:$0xf]
    %v131 = vld [vmem:[#allocation5 + $0x28] sm:$0xf]
    %v132 = vld [vmem:[#allocation5 + $0x2c] sm:$0xf]
    %v133 = vld [vmem:[#allocation5 + $0x30] sm:$0xf]
    %v134 = vld [vmem:[#allocation5 + $0x34] sm:$0xf]
    %v135 = vld [vmem:[#allocation5 + $0x38] sm:$0xf]
    %v136 = vld [vmem:[#allocation5 + $0x3c] sm:$0xf]
    %v137 = vunpack.c.l.bf16 %v121
    %v138 = vunpack.c.l.bf16 %v122
    %v139 = vunpack.c.l.bf16 %v123
    %v140 = vunpack.c.l.bf16 %v124
    %v141 = vunpack.c.l.bf16 %v125
    %v142 = vunpack.c.l.bf16 %v126
    %v143 = vunpack.c.l.bf16 %v127
    %v144 = vunpack.c.l.bf16 %v128
    %v145 = vunpack.c.l.bf16 %v129
    %v146 = vunpack.c.l.bf16 %v130
    %v147 = vunpack.c.l.bf16 %v131
    %v148 = vunpack.c.l.bf16 %v132
    %v149 = vunpack.c.l.bf16 %v133
    %v150 = vunpack.c.l.bf16 %v134
    %v151 = vunpack.c.l.bf16 %v135
    %v152 = vunpack.c.l.bf16 %v136
    %154 = vset.pattern.permute.xlu0 0
    %155 = vperm.xlu0 %154, %v105
    %v156 = vpop.permute.xlu0 %155
    %159 = vset.pattern.permute.xlu0 0
    %160 = vperm.xlu0 %159, %v106
    %v161 = vpop.permute.xlu0 %160
    %164 = vset.pattern.permute.xlu0 0
    %165 = vperm.xlu0 %164, %v107
    %v166 = vpop.permute.xlu0 %165
    %169 = vset.pattern.permute.xlu0 0
    %170 = vperm.xlu0 %169, %v108
    %v171 = vpop.permute.xlu0 %170
    %174 = vset.pattern.permute.xlu0 0
    %175 = vperm.xlu0 %174, %v109
    %v176 = vpop.permute.xlu0 %175
    %179 = vset.pattern.permute.xlu0 0
    %180 = vperm.xlu0 %179, %v110
    %v181 = vpop.permute.xlu0 %180
    %184 = vset.pattern.permute.xlu0 0
    %185 = vperm.xlu0 %184, %v111
    %v186 = vpop.permute.xlu0 %185
    %189 = vset.pattern.permute.xlu0 0
    %190 = vperm.xlu0 %189, %v112
    %v191 = vpop.permute.xlu0 %190
    %194 = vset.pattern.permute.xlu0 0
    %195 = vperm.xlu0 %194, %v113
    %v196 = vpop.permute.xlu0 %195
    %199 = vset.pattern.permute.xlu0 0
    %200 = vperm.xlu0 %199, %v114
    %v201 = vpop.permute.xlu0 %200
    %204 = vset.pattern.permute.xlu0 0
    %205 = vperm.xlu0 %204, %v115
    %v206 = vpop.permute.xlu0 %205
    %209 = vset.pattern.permute.xlu0 0
    %210 = vperm.xlu0 %209, %v116
    %v211 = vpop.permute.xlu0 %210
    %214 = vset.pattern.permute.xlu0 0
    %215 = vperm.xlu0 %214, %v117
    %v216 = vpop.permute.xlu0 %215
    %219 = vset.pattern.permute.xlu0 0
    %220 = vperm.xlu0 %219, %v118
    %v221 = vpop.permute.xlu0 %220
    %224 = vset.pattern.permute.xlu0 0
    %225 = vperm.xlu0 %224, %v119
    %v226 = vpop.permute.xlu0 %225
    %229 = vset.pattern.permute.xlu0 0
    %230 = vperm.xlu0 %229, %v120
    %v231 = vpop.permute.xlu0 %230
    %v233 = vmul.f32 %v137, %v156
    %v234 = vmul.f32 %v138, %v161
    %v235 = vmul.f32 %v139, %v166
    %v236 = vmul.f32 %v140, %v171
    %v237 = vmul.f32 %v141, %v176
    %v238 = vmul.f32 %v142, %v181
    %v239 = vmul.f32 %v143, %v186
    %v240 = vmul.f32 %v144, %v191
    %v241 = vmul.f32 %v145, %v196
    %v242 = vmul.f32 %v146, %v201
    %v243 = vmul.f32 %v147, %v206
    %v244 = vmul.f32 %v148, %v211
    %v245 = vmul.f32 %v149, %v216
    %v246 = vmul.f32 %v150, %v221
    %v247 = vmul.f32 %v151, %v226
    %v248 = vmul.f32 %v152, %v231
    %v249 = vpack.c.bf16 %v234, %v233
    %v250 = vpack.c.bf16 %v236, %v235
    %v251 = vpack.c.bf16 %v238, %v237
    %v252 = vpack.c.bf16 %v240, %v239
    %v253 = vpack.c.bf16 %v242, %v241
    %v254 = vpack.c.bf16 %v244, %v243
    %v255 = vpack.c.bf16 %v246, %v245
    %v256 = vpack.c.bf16 %v248, %v247
    %v273 = vunpack.c.l.b16 %v89
    %v274 = vunpack.c.l.b16 %v90
    %v275 = vunpack.c.l.b16 %v91
    %v276 = vunpack.c.l.b16 %v92
    %v277 = vunpack.c.l.b16 %v93
    %v278 = vunpack.c.l.b16 %v94
    %v279 = vunpack.c.l.b16 %v95
    %v280 = vunpack.c.l.b16 %v96
    %v281 = vunpack.c.l.b16 %v97
    %v282 = vunpack.c.l.b16 %v98
    %v283 = vunpack.c.l.b16 %v99
    %v284 = vunpack.c.l.b16 %v100
    %v285 = vunpack.c.l.b16 %v101
    %v286 = vunpack.c.l.b16 %v102
    %v287 = vunpack.c.l.b16 %v103
    %v288 = vunpack.c.l.b16 %v104
    %v289 = vpack.c.b16 %v274, %v273
    %v290 = vpack.c.b16 %v276, %v275
    %v291 = vpack.c.b16 %v278, %v277
    %v292 = vpack.c.b16 %v280, %v279
    %v293 = vpack.c.b16 %v282, %v281
    %v294 = vpack.c.b16 %v284, %v283
    %v295 = vpack.c.b16 %v286, %v285
    %v296 = vpack.c.b16 %v288, %v287
    %305 = vmatprep.subr.bf16.mxu0 0
    %306 = vmatpush1.bf16.msra.mxu0 %v249
    %307 = vmatprep.subr.bf16.mxu0 0
    %308 = vmatpush1.bf16.msra.mxu0 %v250
    %309 = vmatprep.subr.bf16.mxu0 0
    %310 = vmatpush1.bf16.msra.mxu0 %v251
    %311 = vmatprep.subr.bf16.mxu0 0
    %312 = vmatpush1.bf16.msra.mxu0 %v252
    %313 = vmatprep.subr.bf16.mxu0 0
    %314 = vmatpush1.bf16.msra.mxu0 %v253
    %315 = vmatprep.subr.bf16.mxu0 0
    %316 = vmatpush1.bf16.msra.mxu0 %v254
    %317 = vmatprep.subr.bf16.mxu0 0
    %318 = vmatpush1.bf16.msra.mxu0 %v255
    %319 = vmatprep.subr.bf16.mxu0 0
    %320 = vmatpush1.bf16.msra.mxu0 %v256
    %321 = vmatprep.subr.bf16.mxu0 0
    %322 = vmatpush1.bf16.msra.mxu0 0
    %323 = vmatprep.subr.bf16.mxu0 0
    %324 = vmatpush1.bf16.msra.mxu0 0
    %325 = vmatprep.subr.bf16.mxu0 0
    %326 = vmatpush1.bf16.msra.mxu0 0
    %327 = vmatprep.subr.bf16.mxu0 0
    %328 = vmatpush1.bf16.msra.mxu0 0
    %329 = vmatprep.subr.bf16.mxu0 0
    %330 = vmatpush1.bf16.msra.mxu0 0
    %331 = vmatprep.subr.bf16.mxu0 0
    %332 = vmatpush1.bf16.msra.mxu0 0
    %333 = vmatprep.subr.bf16.mxu0 0
    %334 = vmatpush1.bf16.msra.mxu0 0
    %335 = vmatprep.subr.bf16.mxu0 0
    %336 = vmatpush1.bf16.msra.mxu0 0
    %337 = vmatprep.mubr.bf16.mxu0 0
    %338 = vmatmul.mubr.bf16.gmra.mrb[0].mxu0 %v289
    %v339 = vpop.f32.mrb[0].mxu0
    %v340 = vadd.f32 0.0, %v339
    %v341 = vpop.f32.mrb[0].mxu0
    %v342 = vpop.f32.mrb[0].mxu0
    %v343 = vadd.f32 0.0, %v342
    %v344 = vpop.f32.mrb[0].mxu0
    %345 = vmatprep.mubr.bf16.mxu0 0
    %346 = vmatmul.mubr.bf16.gmra.mrb[0].mxu0 %v290
    %v347 = vpop.f32.mrb[0].mxu0
    %v348 = vadd.f32 0.0, %v347
    %v349 = vpop.f32.mrb[0].mxu0
    %v350 = vpop.f32.mrb[0].mxu0
    %v351 = vadd.f32 0.0, %v350
    %v352 = vpop.f32.mrb[0].mxu0
    %353 = vmatprep.mubr.bf16.mxu0 0
    %354 = vmatmul.mubr.bf16.gmra.mrb[0].mxu0 %v291
    %v355 = vpop.f32.mrb[0].mxu0
    %v356 = vadd.f32 0.0, %v355
    %v357 = vpop.f32.mrb[0].mxu0
    %v358 = vpop.f32.mrb[0].mxu0
    %v359 = vadd.f32 0.0, %v358
    %v360 = vpop.f32.mrb[0].mxu0
    %361 = vmatprep.mubr.bf16.mxu0 0
    %362 = vmatmul.mubr.bf16.gmra.mrb[0].mxu0 %v292
    %v363 = vpop.f32.mrb[0].mxu0
    %v364 = vadd.f32 0.0, %v363
    %v365 = vpop.f32.mrb[0].mxu0
    %v366 = vpop.f32.mrb[0].mxu0
    %v367 = vadd.f32 0.0, %v366
    %v368 = vpop.f32.mrb[0].mxu0
    %369 = vmatprep.mubr.bf16.mxu0 0
    %370 = vmatmul.mubr.bf16.gmra.mrb[0].mxu0 %v293
    %v371 = vpop.f32.mrb[0].mxu0
    %v372 = vadd.f32 0.0, %v371
    %v373 = vpop.f32.mrb[0].mxu0
    %v374 = vpop.f32.mrb[0].mxu0
    %v375 = vadd.f32 0.0, %v374
    %v376 = vpop.f32.mrb[0].mxu0
    %377 = vmatprep.mubr.bf16.mxu0 0
    %378 = vmatmul.mubr.bf16.gmra.mrb[0].mxu0 %v294
    %v379 = vpop.f32.mrb[0].mxu0
    %v380 = vadd.f32 0.0, %v379
    %v381 = vpop.f32.mrb[0].mxu0
    %v382 = vpop.f32.mrb[0].mxu0
    %v383 = vadd.f32 0.0, %v382
    %v384 = vpop.f32.mrb[0].mxu0
    %385 = vmatprep.mubr.bf16.mxu0 0
    %386 = vmatmul.mubr.bf16.gmra.mrb[0].mxu0 %v295
    %v387 = vpop.f32.mrb[0].mxu0
    %v388 = vadd.f32 0.0, %v387
    %v389 = vpop.f32.mrb[0].mxu0
    %v390 = vpop.f32.mrb[0].mxu0
    %v391 = vadd.f32 0.0, %v390
    %v392 = vpop.f32.mrb[0].mxu0
    %393 = vmatprep.mubr.bf16.mxu0 0
    %394 = vmatmul.mubr.bf16.gmra.mrb[0].mxu0 %v296
    %v395 = vpop.f32.mrb[0].mxu0
    %v396 = vadd.f32 0.0, %v395
    %v397 = vpop.f32.mrb[0].mxu0
    %v398 = vpop.f32.mrb[0].mxu0
    %v399 = vadd.f32 0.0, %v398
    %v400 = vpop.f32.mrb[0].mxu0
    %401 = vdwg.mxu0
    %v402 = vmul.f32 %v340, %v156
    %v403 = vmul.f32 %v343, %v161
    %v404 = vmul.f32 %v348, %v166
    %v405 = vmul.f32 %v351, %v171
    %v406 = vmul.f32 %v356, %v176
    %v407 = vmul.f32 %v359, %v181
    %v408 = vmul.f32 %v364, %v186
    %v409 = vmul.f32 %v367, %v191
    %v410 = vmul.f32 %v372, %v196
    %v411 = vmul.f32 %v375, %v201
    %v412 = vmul.f32 %v380, %v206
    %v413 = vmul.f32 %v383, %v211
    %v414 = vmul.f32 %v388, %v216
    %v415 = vmul.f32 %v391, %v221
    %v416 = vmul.f32 %v396, %v226
    %v417 = vmul.f32 %v399, %v231
    %v418 = vld [vmem:[%s3] sm:$0xff]
    %v419 = vld [vmem:[%s3 + $0x8] sm:$0xff]
    %v420 = vld [vmem:[%s3 + $0x10] sm:$0xff]
    %v421 = vld [vmem:[%s3 + $0x18] sm:$0xff]
    %v422 = vld [vmem:[%s3 + $0x20] sm:$0xff]
    %v423 = vld [vmem:[%s3 + $0x28] sm:$0xff]
    %v424 = vld [vmem:[%s3 + $0x30] sm:$0xff]
    %v425 = vld [vmem:[%s3 + $0x38] sm:$0xff]
    %v426 = vld [vmem:[%s3 + $0x40] sm:$0xff]
    %v427 = vld [vmem:[%s3 + $0x48] sm:$0xff]
    %v428 = vld [vmem:[%s3 + $0x50] sm:$0xff]
    %v429 = vld [vmem:[%s3 + $0x58] sm:$0xff]
    %v430 = vld [vmem:[%s3 + $0x60] sm:$0xff]
    %v431 = vld [vmem:[%s3 + $0x68] sm:$0xff]
    %v432 = vld [vmem:[%s3 + $0x70] sm:$0xff]
    %v433 = vld [vmem:[%s3 + $0x78] sm:$0xff]
    %v434 = vld [vmem:[%s4] sm:$0x1]
    %v436 = vlaneseq
    %v437 = vshrl.u32 %v436, 7
    %v438 = vsub.s32 0, %v437
    %v439 = vrot.slane %v434, %v438
    %441 = vmatprep.subr.mxu0 0.0
    %442 = vmatpush1.msra.mxu0 %v418
    %443 = vmatprep.subr.mxu0 0.0
    %444 = vmatpush1.msra.mxu0 %v419
    %445 = vmatprep.subr.mxu0 0.0
    %446 = vmatpush1.msra.mxu0 %v420
    %447 = vmatprep.subr.mxu0 0.0
    %448 = vmatpush1.msra.mxu0 %v421
    %449 = vmatprep.subr.mxu0 0.0
    %450 = vmatpush1.msra.mxu0 %v422
    %451 = vmatprep.subr.mxu0 0.0
    %452 = vmatpush1.msra.mxu0 %v423
    %453 = vmatprep.subr.mxu0 0.0
    %454 = vmatpush1.msra.mxu0 %v424
    %455 = vmatprep.subr.mxu0 0.0
    %456 = vmatpush1.msra.mxu0 %v425
    %457 = vmatprep.subr.mxu0 0.0
    %458 = vmatpush1.msra.mxu0 %v426
    %459 = vmatprep.subr.mxu0 0.0
    %460 = vmatpush1.msra.mxu0 %v427
    %461 = vmatprep.subr.mxu0 0.0
    %462 = vmatpush1.msra.mxu0 %v428
    %463 = vmatprep.subr.mxu0 0.0
    %464 = vmatpush1.msra.mxu0 %v429
    %465 = vmatprep.subr.mxu0 0.0
    %466 = vmatpush1.msra.mxu0 %v430
    %467 = vmatprep.subr.mxu0 0.0
    %468 = vmatpush1.msra.mxu0 %v431
    %469 = vmatprep.subr.mxu0 0.0
    %470 = vmatpush1.msra.mxu0 %v432
    %471 = vmatprep.subr.mxu0 0.0
    %472 = vmatpush1.msra.mxu0 %v433
    %473 = vmatprep.subr.mxu0 0.0
    %474 = vmatpush1.msra.mxu0 0.0
    %475 = vmatprep.subr.mxu0 0.0
    %476 = vmatpush1.msra.mxu0 0.0
    %477 = vmatprep.subr.mxu0 0.0
    %478 = vmatpush1.msra.mxu0 0.0
    %479 = vmatprep.subr.mxu0 0.0
    %480 = vmatpush1.msra.mxu0 0.0
    %481 = vmatprep.subr.mxu0 0.0
    %482 = vmatpush1.msra.mxu0 0.0
    %483 = vmatprep.subr.mxu0 0.0
    %484 = vmatpush1.msra.mxu0 0.0
    %485 = vmatprep.subr.mxu0 0.0
    %486 = vmatpush1.msra.mxu0 0.0
    %487 = vmatprep.subr.mxu0 0.0
    %488 = vmatpush1.msra.mxu0 0.0
    %489 = vmatprep.subr.mxu0 0.0
    %490 = vmatpush1.msra.mxu0 0.0
    %491 = vmatprep.subr.mxu0 0.0
    %492 = vmatpush1.msra.mxu0 0.0
    %493 = vmatprep.subr.mxu0 0.0
    %494 = vmatpush1.msra.mxu0 0.0
    %495 = vmatprep.subr.mxu0 0.0
    %496 = vmatpush1.msra.mxu0 0.0
    %497 = vmatprep.subr.mxu0 0.0
    %498 = vmatpush1.msra.mxu0 0.0
    %499 = vmatprep.subr.mxu0 0.0
    %500 = vmatpush1.msra.mxu0 0.0
    %501 = vmatprep.subr.mxu0 0.0
    %502 = vmatpush1.msra.mxu0 0.0
    %503 = vmatprep.subr.mxu0 0.0
    %504 = vmatpush1.msra.mxu0 0.0
    %505 = vmatprep.mubr.f32.mxu0 0.0
    %506 = vmatmul.mubr.f32.gmra.mrb[0].mxu0 %v402
    %v507 = vpop.f32.mrb[0].mxu0
    %v508 = vadd.f32 %v439, %v507
    %v509 = vpop.f32.mrb[0].mxu0
    %510 = vmatprep.mubr.f32.mxu0 0.0
    %511 = vmatmul.mubr.f32.gmra.mrb[0].mxu0 %v403
    %v512 = vpop.f32.mrb[0].mxu0
    %v513 = vadd.f32 %v439, %v512
    %v514 = vpop.f32.mrb[0].mxu0
    %515 = vmatprep.mubr.f32.mxu0 0.0
    %516 = vmatmul.mubr.f32.gmra.mrb[0].mxu0 %v404
    %v517 = vpop.f32.mrb[0].mxu0
    %v518 = vadd.f32 %v439, %v517
    %v519 = vpop.f32.mrb[0].mxu0
    %520 = vmatprep.mubr.f32.mxu0 0.0
    %521 = vmatmul.mubr.f32.gmra.mrb[0].mxu0 %v405
    %v522 = vpop.f32.mrb[0].mxu0
    %v523 = vadd.f32 %v439, %v522
    %v524 = vpop.f32.mrb[0].mxu0
    %525 = vmatprep.mubr.f32.mxu0 0.0
    %526 = vmatmul.mubr.f32.gmra.mrb[0].mxu0 %v406
    %v527 = vpop.f32.mrb[0].mxu0
    %v528 = vadd.f32 %v439, %v527
    %v529 = vpop.f32.mrb[0].mxu0
    %530 = vmatprep.mubr.f32.mxu0 0.0
    %531 = vmatmul.mubr.f32.gmra.mrb[0].mxu0 %v407
    %v532 = vpop.f32.mrb[0].mxu0
    %v533 = vadd.f32 %v439, %v532
    %v534 = vpop.f32.mrb[0].mxu0
    %535 = vmatprep.mubr.f32.mxu0 0.0
    %536 = vmatmul.mubr.f32.gmra.mrb[0].mxu0 %v408
    %v537 = vpop.f32.mrb[0].mxu0
    %v538 = vadd.f32 %v439, %v537
    %v539 = vpop.f32.mrb[0].mxu0
    %540 = vmatprep.mubr.f32.mxu0 0.0
    %541 = vmatmul.mubr.f32.gmra.mrb[0].mxu0 %v409
    %v542 = vpop.f32.mrb[0].mxu0
    %v543 = vadd.f32 %v439, %v542
    %v544 = vpop.f32.mrb[0].mxu0
    %545 = vmatprep.mubr.f32.mxu0 0.0
    %546 = vmatmul.mubr.f32.gmra.mrb[0].mxu0 %v410
    %v547 = vpop.f32.mrb[0].mxu0
    %v548 = vadd.f32 %v439, %v547
    %v549 = vpop.f32.mrb[0].mxu0
    %550 = vmatprep.mubr.f32.mxu0 0.0
    %551 = vmatmul.mubr.f32.gmra.mrb[0].mxu0 %v411
    %v552 = vpop.f32.mrb[0].mxu0
    %v553 = vadd.f32 %v439, %v552
    %v554 = vpop.f32.mrb[0].mxu0
    %555 = vmatprep.mubr.f32.mxu0 0.0
    %556 = vmatmul.mubr.f32.gmra.mrb[0].mxu0 %v412
    %v557 = vpop.f32.mrb[0].mxu0
    %v558 = vadd.f32 %v439, %v557
    %v559 = vpop.f32.mrb[0].mxu0
    %560 = vmatprep.mubr.f32.mxu0 0.0
    %561 = vmatmul.mubr.f32.gmra.mrb[0].mxu0 %v413
    %v562 = vpop.f32.mrb[0].mxu0
    %v563 = vadd.f32 %v439, %v562
    %v564 = vpop.f32.mrb[0].mxu0
    %565 = vmatprep.mubr.f32.mxu0 0.0
    %566 = vmatmul.mubr.f32.gmra.mrb[0].mxu0 %v414
    %v567 = vpop.f32.mrb[0].mxu0
    %v568 = vadd.f32 %v439, %v567
    %v569 = vpop.f32.mrb[0].mxu0
    %570 = vmatprep.mubr.f32.mxu0 0.0
    %571 = vmatmul.mubr.f32.gmra.mrb[0].mxu0 %v415
    %v572 = vpop.f32.mrb[0].mxu0
    %v573 = vadd.f32 %v439, %v572
    %v574 = vpop.f32.mrb[0].mxu0
    %575 = vmatprep.mubr.f32.mxu0 0.0
    %576 = vmatmul.mubr.f32.gmra.mrb[0].mxu0 %v416
    %v577 = vpop.f32.mrb[0].mxu0
    %v578 = vadd.f32 %v439, %v577
    %v579 = vpop.f32.mrb[0].mxu0
    %580 = vmatprep.mubr.f32.mxu0 0.0
    %581 = vmatmul.mubr.f32.gmra.mrb[0].mxu0 %v417
    %v582 = vpop.f32.mrb[0].mxu0
    %v583 = vadd.f32 %v439, %v582
    %v584 = vpop.f32.mrb[0].mxu0
    %585 = vdwg.mxu0
    %v586 = vmax.f32 %v508, 0.0
    %v587 = vmax.f32 %v513, 0.0
    %v588 = vmax.f32 %v518, 0.0
    %v589 = vmax.f32 %v523, 0.0
    %v590 = vmax.f32 %v528, 0.0
    %v591 = vmax.f32 %v533, 0.0
    %v592 = vmax.f32 %v538, 0.0
    %v593 = vmax.f32 %v543, 0.0
    %v594 = vmax.f32 %v548, 0.0
    %v595 = vmax.f32 %v553, 0.0
    %v596 = vmax.f32 %v558, 0.0
    %v597 = vmax.f32 %v563, 0.0
    %v598 = vmax.f32 %v568, 0.0
    %v599 = vmax.f32 %v573, 0.0
    %v600 = vmax.f32 %v578, 0.0
    %v601 = vmax.f32 %v583, 0.0
    %v602 = vpack.c.bf16 %v587, %v586
    %v603 = vpack.c.bf16 %v589, %v588
    %v604 = vpack.c.bf16 %v591, %v590
    %v605 = vpack.c.bf16 %v593, %v592
    %v606 = vpack.c.bf16 %v595, %v594
    %v607 = vpack.c.bf16 %v597, %v596
    %v608 = vpack.c.bf16 %v599, %v598
    %v609 = vpack.c.bf16 %v601, %v600
    %v610 = vunpack.c.l.bf16 %v602
    %v611 = vunpack.c.h.bf16 %v602
    %v612 = vunpack.c.l.bf16 %v603
    %v613 = vunpack.c.h.bf16 %v603
    %v614 = vunpack.c.l.bf16 %v604
    %v615 = vunpack.c.h.bf16 %v604
    %v616 = vunpack.c.l.bf16 %v605
    %v617 = vunpack.c.h.bf16 %v605
    %v618 = vunpack.c.l.bf16 %v606
    %v619 = vunpack.c.h.bf16 %v606
    %v620 = vunpack.c.l.bf16 %v607
    %v621 = vunpack.c.h.bf16 %v607
    %v622 = vunpack.c.l.bf16 %v608
    %v623 = vunpack.c.h.bf16 %v608
    %v624 = vunpack.c.l.bf16 %v609
    %v625 = vunpack.c.h.bf16 %v609
    %v626 = vmul.f32 %v610, %v156
    %v627 = vmul.f32 %v611, %v161
    %v628 = vmul.f32 %v612, %v166
    %v629 = vmul.f32 %v613, %v171
    %v630 = vmul.f32 %v614, %v176
    %v631 = vmul.f32 %v615, %v181
    %v632 = vmul.f32 %v616, %v186
    %v633 = vmul.f32 %v617, %v191
    %v634 = vmul.f32 %v618, %v196
    %v635 = vmul.f32 %v619, %v201
    %v636 = vmul.f32 %v620, %v206
    %v637 = vmul.f32 %v621, %v211
    %v638 = vmul.f32 %v622, %v216
    %v639 = vmul.f32 %v623, %v221
    %v640 = vmul.f32 %v624, %v226
    %v641 = vmul.f32 %v625, %v231
    %v642 = vpack.c.bf16 %v627, %v626
    %v643 = vpack.c.bf16 %v629, %v628
    %v644 = vpack.c.bf16 %v631, %v630
    %v645 = vpack.c.bf16 %v633, %v632
    %v646 = vpack.c.bf16 %v635, %v634
    %v647 = vpack.c.bf16 %v637, %v636
    %v648 = vpack.c.bf16 %v639, %v638
    %v649 = vpack.c.bf16 %v641, %v640
    %650 = vmatprep.subr.bf16.mxu0 0
    %651 = vmatpush1.bf16.msra.mxu0 %v642
    %652 = vmatprep.subr.bf16.mxu0 0
    %653 = vmatpush1.bf16.msra.mxu0 %v643
    %654 = vmatprep.subr.bf16.mxu0 0
    %655 = vmatpush1.bf16.msra.mxu0 %v644
    %656 = vmatprep.subr.bf16.mxu0 0
    %657 = vmatpush1.bf16.msra.mxu0 %v645
    %658 = vmatprep.subr.bf16.mxu0 0
    %659 = vmatpush1.bf16.msra.mxu0 %v646
    %660 = vmatprep.subr.bf16.mxu0 0
    %661 = vmatpush1.bf16.msra.mxu0 %v647
    %662 = vmatprep.subr.bf16.mxu0 0
    %663 = vmatpush1.bf16.msra.mxu0 %v648
    %664 = vmatprep.subr.bf16.mxu0 0
    %665 = vmatpush1.bf16.msra.mxu0 %v649
    %666 = vmatprep.subr.bf16.mxu0 0
    %667 = vmatpush1.bf16.msra.mxu0 0
    %668 = vmatprep.subr.bf16.mxu0 0
    %669 = vmatpush1.bf16.msra.mxu0 0
    %670 = vmatprep.subr.bf16.mxu0 0
    %671 = vmatpush1.bf16.msra.mxu0 0
    %672 = vmatprep.subr.bf16.mxu0 0
    %673 = vmatpush1.bf16.msra.mxu0 0
    %674 = vmatprep.subr.bf16.mxu0 0
    %675 = vmatpush1.bf16.msra.mxu0 0
    %676 = vmatprep.subr.bf16.mxu0 0
    %677 = vmatpush1.bf16.msra.mxu0 0
    %678 = vmatprep.subr.bf16.mxu0 0
    %679 = vmatpush1.bf16.msra.mxu0 0
    %680 = vmatprep.subr.bf16.mxu0 0
    %681 = vmatpush1.bf16.msra.mxu0 0
    %682 = vmatprep.mubr.bf16.mxu0 0
    %683 = vmatmul.mubr.bf16.gmra.mrb[0].mxu0 %v289
    %v684 = vpop.f32.mrb[0].mxu0
    %v685 = vadd.f32 0.0, %v684
    %v686 = vpop.f32.mrb[0].mxu0
    %v687 = vpop.f32.mrb[0].mxu0
    %v688 = vadd.f32 0.0, %v687
    %v689 = vpop.f32.mrb[0].mxu0
    %690 = vmatprep.mubr.bf16.mxu0 0
    %691 = vmatmul.mubr.bf16.gmra.mrb[0].mxu0 %v290
    %v692 = vpop.f32.mrb[0].mxu0
    %v693 = vadd.f32 0.0, %v692
    %v694 = vpop.f32.mrb[0].mxu0
    %v695 = vpop.f32.mrb[0].mxu0
    %v696 = vadd.f32 0.0, %v695
    %v697 = vpop.f32.mrb[0].mxu0
    %698 = vmatprep.mubr.bf16.mxu0 0
    %699 = vmatmul.mubr.bf16.gmra.mrb[0].mxu0 %v291
    %v700 = vpop.f32.mrb[0].mxu0
    %v701 = vadd.f32 0.0, %v700
    %v702 = vpop.f32.mrb[0].mxu0
    %v703 = vpop.f32.mrb[0].mxu0
    %v704 = vadd.f32 0.0, %v703
    %v705 = vpop.f32.mrb[0].mxu0
    %706 = vmatprep.mubr.bf16.mxu0 0
    %707 = vmatmul.mubr.bf16.gmra.mrb[0].mxu0 %v292
    %v708 = vpop.f32.mrb[0].mxu0
    %v709 = vadd.f32 0.0, %v708
    %v710 = vpop.f32.mrb[0].mxu0
    %v711 = vpop.f32.mrb[0].mxu0
    %v712 = vadd.f32 0.0, %v711
    %v713 = vpop.f32.mrb[0].mxu0
    %714 = vmatprep.mubr.bf16.mxu0 0
    %715 = vmatmul.mubr.bf16.gmra.mrb[0].mxu0 %v293
    %v716 = vpop.f32.mrb[0].mxu0
    %v717 = vadd.f32 0.0, %v716
    %v718 = vpop.f32.mrb[0].mxu0
    %v719 = vpop.f32.mrb[0].mxu0
    %v720 = vadd.f32 0.0, %v719
    %v721 = vpop.f32.mrb[0].mxu0
    %722 = vmatprep.mubr.bf16.mxu0 0
    %723 = vmatmul.mubr.bf16.gmra.mrb[0].mxu0 %v294
    %v724 = vpop.f32.mrb[0].mxu0
    %v725 = vadd.f32 0.0, %v724
    %v726 = vpop.f32.mrb[0].mxu0
    %v727 = vpop.f32.mrb[0].mxu0
    %v728 = vadd.f32 0.0, %v727
    %v729 = vpop.f32.mrb[0].mxu0
    %730 = vmatprep.mubr.bf16.mxu0 0
    %731 = vmatmul.mubr.bf16.gmra.mrb[0].mxu0 %v295
    %v732 = vpop.f32.mrb[0].mxu0
    %v733 = vadd.f32 0.0, %v732
    %v734 = vpop.f32.mrb[0].mxu0
    %v735 = vpop.f32.mrb[0].mxu0
    %v736 = vadd.f32 0.0, %v735
    %v737 = vpop.f32.mrb[0].mxu0
    %738 = vmatprep.mubr.bf16.mxu0 0
    %739 = vmatmul.mubr.bf16.gmra.mrb[0].mxu0 %v296
    %v740 = vpop.f32.mrb[0].mxu0
    %v741 = vadd.f32 0.0, %v740
    %v742 = vpop.f32.mrb[0].mxu0
    %v743 = vpop.f32.mrb[0].mxu0
    %v744 = vadd.f32 0.0, %v743
    %v745 = vpop.f32.mrb[0].mxu0
    %746 = vdwg.mxu0
    %v747 = vmul.f32 %v685, %v156
    %v748 = vmul.f32 %v688, %v161
    %v749 = vmul.f32 %v693, %v166
    %v750 = vmul.f32 %v696, %v171
    %v751 = vmul.f32 %v701, %v176
    %v752 = vmul.f32 %v704, %v181
    %v753 = vmul.f32 %v709, %v186
    %v754 = vmul.f32 %v712, %v191
    %v755 = vmul.f32 %v717, %v196
    %v756 = vmul.f32 %v720, %v201
    %v757 = vmul.f32 %v725, %v206
    %v758 = vmul.f32 %v728, %v211
    %v759 = vmul.f32 %v733, %v216
    %v760 = vmul.f32 %v736, %v221
    %v761 = vmul.f32 %v741, %v226
    %v762 = vmul.f32 %v744, %v231
    %v763 = vld [vmem:[#allocation7] sm:$0xff]
    %v764 = vld [vmem:[#allocation7 + $0x8] sm:$0xff]
    %v765 = vld [vmem:[#allocation7 + $0x10] sm:$0xff]
    %v766 = vld [vmem:[#allocation7 + $0x18] sm:$0xff]
    %v767 = vld [vmem:[#allocation7 + $0x20] sm:$0xff]
    %v768 = vld [vmem:[#allocation7 + $0x28] sm:$0xff]
    %v769 = vld [vmem:[#allocation7 + $0x30] sm:$0xff]
    %v770 = vld [vmem:[#allocation7 + $0x38] sm:$0xff]
    %v771 = vld [vmem:[#allocation7 + $0x40] sm:$0xff]
    %v772 = vld [vmem:[#allocation7 + $0x48] sm:$0xff]
    %v773 = vld [vmem:[#allocation7 + $0x50] sm:$0xff]
    %v774 = vld [vmem:[#allocation7 + $0x58] sm:$0xff]
    %v775 = vld [vmem:[#allocation7 + $0x60] sm:$0xff]
    %v776 = vld [vmem:[#allocation7 + $0x68] sm:$0xff]
    %v777 = vld [vmem:[#allocation7 + $0x70] sm:$0xff]
    %v778 = vld [vmem:[#allocation7 + $0x78] sm:$0xff]
    %v779 = vld [vmem:[%s6] sm:$0x1]
    %v781 = vlaneseq
    %v782 = vshrl.u32 %v781, 7
    %v783 = vsub.s32 0, %v782
    %v784 = vrot.slane %v779, %v783
    %786 = vmatprep.subr.mxu0 0.0
    %787 = vmatpush1.msra.mxu0 %v763
    %788 = vmatprep.subr.mxu0 0.0
    %789 = vmatpush1.msra.mxu0 %v764
    %790 = vmatprep.subr.mxu0 0.0
    %791 = vmatpush1.msra.mxu0 %v765
    %792 = vmatprep.subr.mxu0 0.0
    %793 = vmatpush1.msra.mxu0 %v766
    %794 = vmatprep.subr.mxu0 0.0
    %795 = vmatpush1.msra.mxu0 %v767
    %796 = vmatprep.subr.mxu0 0.0
    %797 = vmatpush1.msra.mxu0 %v768
    %798 = vmatprep.subr.mxu0 0.0
    %799 = vmatpush1.msra.mxu0 %v769
    %800 = vmatprep.subr.mxu0 0.0
    %801 = vmatpush1.msra.mxu0 %v770
    %802 = vmatprep.subr.mxu0 0.0
    %803 = vmatpush1.msra.mxu0 %v771
    %804 = vmatprep.subr.mxu0 0.0
    %805 = vmatpush1.msra.mxu0 %v772
    %806 = vmatprep.subr.mxu0 0.0
    %807 = vmatpush1.msra.mxu0 %v773
    %808 = vmatprep.subr.mxu0 0.0
    %809 = vmatpush1.msra.mxu0 %v774
    %810 = vmatprep.subr.mxu0 0.0
    %811 = vmatpush1.msra.mxu0 %v775
    %812 = vmatprep.subr.mxu0 0.0
    %813 = vmatpush1.msra.mxu0 %v776
    %814 = vmatprep.subr.mxu0 0.0
    %815 = vmatpush1.msra.mxu0 %v777
    %816 = vmatprep.subr.mxu0 0.0
    %817 = vmatpush1.msra.mxu0 %v778
    %818 = vmatprep.subr.mxu0 0.0
    %819 = vmatpush1.msra.mxu0 0.0
    %820 = vmatprep.subr.mxu0 0.0
    %821 = vmatpush1.msra.mxu0 0.0
    %822 = vmatprep.subr.mxu0 0.0
    %823 = vmatpush1.msra.mxu0 0.0
    %824 = vmatprep.subr.mxu0 0.0
    %825 = vmatpush1.msra.mxu0 0.0
    %826 = vmatprep.subr.mxu0 0.0
    %827 = vmatpush1.msra.mxu0 0.0
    %828 = vmatprep.subr.mxu0 0.0
    %829 = vmatpush1.msra.mxu0 0.0
    %830 = vmatprep.subr.mxu0 0.0
    %831 = vmatpush1.msra.mxu0 0.0
    %832 = vmatprep.subr.mxu0 0.0
    %833 = vmatpush1.msra.mxu0 0.0
    %834 = vmatprep.subr.mxu0 0.0
    %835 = vmatpush1.msra.mxu0 0.0
    %836 = vmatprep.subr.mxu0 0.0
    %837 = vmatpush1.msra.mxu0 0.0
    %838 = vmatprep.subr.mxu0 0.0
    %839 = vmatpush1.msra.mxu0 0.0
    %840 = vmatprep.subr.mxu0 0.0
    %841 = vmatpush1.msra.mxu0 0.0
    %842 = vmatprep.subr.mxu0 0.0
    %843 = vmatpush1.msra.mxu0 0.0
    %844 = vmatprep.subr.mxu0 0.0
    %845 = vmatpush1.msra.mxu0 0.0
    %846 = vmatprep.subr.mxu0 0.0
    %847 = vmatpush1.msra.mxu0 0.0
    %848 = vmatprep.subr.mxu0 0.0
    %849 = vmatpush1.msra.mxu0 0.0
    %850 = vmatprep.mubr.f32.mxu0 0.0
    %851 = vmatmul.mubr.f32.gmra.mrb[0].mxu0 %v747
    %v852 = vpop.f32.mrb[0].mxu0
    %v853 = vadd.f32 %v784, %v852
    %v854 = vpop.f32.mrb[0].mxu0
    %855 = vmatprep.mubr.f32.mxu0 0.0
    %856 = vmatmul.mubr.f32.gmra.mrb[0].mxu0 %v748
    %v857 = vpop.f32.mrb[0].mxu0
    %v858 = vadd.f32 %v784, %v857
    %v859 = vpop.f32.mrb[0].mxu0
    %860 = vmatprep.mubr.f32.mxu0 0.0
    %861 = vmatmul.mubr.f32.gmra.mrb[0].mxu0 %v749
    %v862 = vpop.f32.mrb[0].mxu0
    %v863 = vadd.f32 %v784, %v862
    %v864 = vpop.f32.mrb[0].mxu0
    %865 = vmatprep.mubr.f32.mxu0 0.0
    %866 = vmatmul.mubr.f32.gmra.mrb[0].mxu0 %v750
    %v867 = vpop.f32.mrb[0].mxu0
    %v868 = vadd.f32 %v784, %v867
    %v869 = vpop.f32.mrb[0].mxu0
    %870 = vmatprep.mubr.f32.mxu0 0.0
    %871 = vmatmul.mubr.f32.gmra.mrb[0].mxu0 %v751
    %v872 = vpop.f32.mrb[0].mxu0
    %v873 = vadd.f32 %v784, %v872
    %v874 = vpop.f32.mrb[0].mxu0
    %875 = vmatprep.mubr.f32.mxu0 0.0
    %876 = vmatmul.mubr.f32.gmra.mrb[0].mxu0 %v752
    %v877 = vpop.f32.mrb[0].mxu0
    %v878 = vadd.f32 %v784, %v877
    %v879 = vpop.f32.mrb[0].mxu0
    %880 = vmatprep.mubr.f32.mxu0 0.0
    %881 = vmatmul.mubr.f32.gmra.mrb[0].mxu0 %v753
    %v882 = vpop.f32.mrb[0].mxu0
    %v883 = vadd.f32 %v784, %v882
    %v884 = vpop.f32.mrb[0].mxu0
    %885 = vmatprep.mubr.f32.mxu0 0.0
    %886 = vmatmul.mubr.f32.gmra.mrb[0].mxu0 %v754
    %v887 = vpop.f32.mrb[0].mxu0
    %v888 = vadd.f32 %v784, %v887
    %v889 = vpop.f32.mrb[0].mxu0
    %890 = vmatprep.mubr.f32.mxu0 0.0
    %891 = vmatmul.mubr.f32.gmra.mrb[0].mxu0 %v755
    %v892 = vpop.f32.mrb[0].mxu0
    %v893 = vadd.f32 %v784, %v892
    %v894 = vpop.f32.mrb[0].mxu0
    %895 = vmatprep.mubr.f32.mxu0 0.0
    %896 = vmatmul.mubr.f32.gmra.mrb[0].mxu0 %v756
    %v897 = vpop.f32.mrb[0].mxu0
    %v898 = vadd.f32 %v784, %v897
    %v899 = vpop.f32.mrb[0].mxu0
    %900 = vmatprep.mubr.f32.mxu0 0.0
    %901 = vmatmul.mubr.f32.gmra.mrb[0].mxu0 %v757
    %v902 = vpop.f32.mrb[0].mxu0
    %v903 = vadd.f32 %v784, %v902
    %v904 = vpop.f32.mrb[0].mxu0
    %905 = vmatprep.mubr.f32.mxu0 0.0
    %906 = vmatmul.mubr.f32.gmra.mrb[0].mxu0 %v758
    %v907 = vpop.f32.mrb[0].mxu0
    %v908 = vadd.f32 %v784, %v907
    %v909 = vpop.f32.mrb[0].mxu0
    %910 = vmatprep.mubr.f32.mxu0 0.0
    %911 = vmatmul.mubr.f32.gmra.mrb[0].mxu0 %v759
    %v912 = vpop.f32.mrb[0].mxu0
    %v913 = vadd.f32 %v784, %v912
    %v914 = vpop.f32.mrb[0].mxu0
    %915 = vmatprep.mubr.f32.mxu0 0.0
    %916 = vmatmul.mubr.f32.gmra.mrb[0].mxu0 %v760
    %v917 = vpop.f32.mrb[0].mxu0
    %v918 = vadd.f32 %v784, %v917
    %v919 = vpop.f32.mrb[0].mxu0
    %920 = vmatprep.mubr.f32.mxu0 0.0
    %921 = vmatmul.mubr.f32.gmra.mrb[0].mxu0 %v761
    %v922 = vpop.f32.mrb[0].mxu0
    %v923 = vadd.f32 %v784, %v922
    %v924 = vpop.f32.mrb[0].mxu0
    %925 = vmatprep.mubr.f32.mxu0 0.0
    %926 = vmatmul.mubr.f32.gmra.mrb[0].mxu0 %v762
    %v927 = vpop.f32.mrb[0].mxu0
    %v928 = vadd.f32 %v784, %v927
    %v929 = vpop.f32.mrb[0].mxu0
    %930 = vdwg.mxu0
    %v931 = vmax.f32 %v853, 0.0
    %v932 = vmax.f32 %v858, 0.0
    %v933 = vmax.f32 %v863, 0.0
    %v934 = vmax.f32 %v868, 0.0
    %v935 = vmax.f32 %v873, 0.0
    %v936 = vmax.f32 %v878, 0.0
    %v937 = vmax.f32 %v883, 0.0
    %v938 = vmax.f32 %v888, 0.0
    %v939 = vmax.f32 %v893, 0.0
    %v940 = vmax.f32 %v898, 0.0
    %v941 = vmax.f32 %v903, 0.0
    %v942 = vmax.f32 %v908, 0.0
    %v943 = vmax.f32 %v913, 0.0
    %v944 = vmax.f32 %v918, 0.0
    %v945 = vmax.f32 %v923, 0.0
    %v946 = vmax.f32 %v928, 0.0
    %v947 = vpack.c.bf16 %v932, %v931
    %v948 = vpack.c.bf16 %v934, %v933
    %v949 = vpack.c.bf16 %v936, %v935
    %v950 = vpack.c.bf16 %v938, %v937
    %v951 = vpack.c.bf16 %v940, %v939
    %v952 = vpack.c.bf16 %v942, %v941
    %v953 = vpack.c.bf16 %v944, %v943
    %v954 = vpack.c.bf16 %v946, %v945
    %v955 = vunpack.c.l.bf16 %v947
    %v956 = vunpack.c.h.bf16 %v947
    %v957 = vunpack.c.l.bf16 %v948
    %v958 = vunpack.c.h.bf16 %v948
    %v959 = vunpack.c.l.bf16 %v949
    %v960 = vunpack.c.h.bf16 %v949
    %v961 = vunpack.c.l.bf16 %v950
    %v962 = vunpack.c.h.bf16 %v950
    %v963 = vunpack.c.l.bf16 %v951
    %v964 = vunpack.c.h.bf16 %v951
    %v965 = vunpack.c.l.bf16 %v952
    %v966 = vunpack.c.h.bf16 %v952
    %v967 = vunpack.c.l.bf16 %v953
    %v968 = vunpack.c.h.bf16 %v953
    %v969 = vunpack.c.l.bf16 %v954
    %v970 = vunpack.c.h.bf16 %v954
    %v971 = vmul.f32 %v955, %v156
    %v972 = vmul.f32 %v956, %v161
    %v973 = vmul.f32 %v957, %v166
    %v974 = vmul.f32 %v958, %v171
    %v975 = vmul.f32 %v959, %v176
    %v976 = vmul.f32 %v960, %v181
    %v977 = vmul.f32 %v961, %v186
    %v978 = vmul.f32 %v962, %v191
    %v979 = vmul.f32 %v963, %v196
    %v980 = vmul.f32 %v964, %v201
    %v981 = vmul.f32 %v965, %v206
    %v982 = vmul.f32 %v966, %v211
    %v983 = vmul.f32 %v967, %v216
    %v984 = vmul.f32 %v968, %v221
    %v985 = vmul.f32 %v969, %v226
    %v986 = vmul.f32 %v970, %v231
    %v987 = vpack.c.bf16 %v972, %v971
    %v988 = vpack.c.bf16 %v974, %v973
    %v989 = vpack.c.bf16 %v976, %v975
    %v990 = vpack.c.bf16 %v978, %v977
    %v991 = vpack.c.bf16 %v980, %v979
    %v992 = vpack.c.bf16 %v982, %v981
    %v993 = vpack.c.bf16 %v984, %v983
    %v994 = vpack.c.bf16 %v986, %v985
    %995 = vmatprep.subr.bf16.mxu0 0
    %996 = vmatpush1.bf16.msra.mxu0 %v987
    %997 = vmatprep.subr.bf16.mxu0 0
    %998 = vmatpush1.bf16.msra.mxu0 %v988
    %999 = vmatprep.subr.bf16.mxu0 0
    %1000 = vmatpush1.bf16.msra.mxu0 %v989
    %1001 = vmatprep.subr.bf16.mxu0 0
    %1002 = vmatpush1.bf16.msra.mxu0 %v990
    %1003 = vmatprep.subr.bf16.mxu0 0
    %1004 = vmatpush1.bf16.msra.mxu0 %v991
    %1005 = vmatprep.subr.bf16.mxu0 0
    %1006 = vmatpush1.bf16.msra.mxu0 %v992
    %1007 = vmatprep.subr.bf16.mxu0 0
    %1008 = vmatpush1.bf16.msra.mxu0 %v993
    %1009 = vmatprep.subr.bf16.mxu0 0
    %1010 = vmatpush1.bf16.msra.mxu0 %v994
    %1011 = vmatprep.subr.bf16.mxu0 0
    %1012 = vmatpush1.bf16.msra.mxu0 0
    %1013 = vmatprep.subr.bf16.mxu0 0
    %1014 = vmatpush1.bf16.msra.mxu0 0
    %1015 = vmatprep.subr.bf16.mxu0 0
    %1016 = vmatpush1.bf16.msra.mxu0 0
    %1017 = vmatprep.subr.bf16.mxu0 0
    %1018 = vmatpush1.bf16.msra.mxu0 0
    %1019 = vmatprep.subr.bf16.mxu0 0
    %1020 = vmatpush1.bf16.msra.mxu0 0
    %1021 = vmatprep.subr.bf16.mxu0 0
    %1022 = vmatpush1.bf16.msra.mxu0 0
    %1023 = vmatprep.subr.bf16.mxu0 0
    %1024 = vmatpush1.bf16.msra.mxu0 0
    %1025 = vmatprep.subr.bf16.mxu0 0
    %1026 = vmatpush1.bf16.msra.mxu0 0
    %1027 = vmatprep.mubr.bf16.mxu0 0
    %1028 = vmatmul.mubr.bf16.gmra.mrb[0].mxu0 %v289
    %v1029 = vpop.f32.mrb[0].mxu0
    %v1030 = vadd.f32 0.0, %v1029
    %v1031 = vpop.f32.mrb[0].mxu0
    %v1032 = vpop.f32.mrb[0].mxu0
    %v1033 = vadd.f32 0.0, %v1032
    %v1034 = vpop.f32.mrb[0].mxu0
    %1035 = vmatprep.mubr.bf16.mxu0 0
    %1036 = vmatmul.mubr.bf16.gmra.mrb[0].mxu0 %v290
    %v1037 = vpop.f32.mrb[0].mxu0
    %v1038 = vadd.f32 0.0, %v1037
    %v1039 = vpop.f32.mrb[0].mxu0
    %v1040 = vpop.f32.mrb[0].mxu0
    %v1041 = vadd.f32 0.0, %v1040
    %v1042 = vpop.f32.mrb[0].mxu0
    %1043 = vmatprep.mubr.bf16.mxu0 0
    %1044 = vmatmul.mubr.bf16.gmra.mrb[0].mxu0 %v291
    %v1045 = vpop.f32.mrb[0].mxu0
    %v1046 = vadd.f32 0.0, %v1045
    %v1047 = vpop.f32.mrb[0].mxu0
    %v1048 = vpop.f32.mrb[0].mxu0
    %v1049 = vadd.f32 0.0, %v1048
    %v1050 = vpop.f32.mrb[0].mxu0
    %1051 = vmatprep.mubr.bf16.mxu0 0
    %1052 = vmatmul.mubr.bf16.gmra.mrb[0].mxu0 %v292
    %v1053 = vpop.f32.mrb[0].mxu0
    %v1054 = vadd.f32 0.0, %v1053
    %v1055 = vpop.f32.mrb[0].mxu0
    %v1056 = vpop.f32.mrb[0].mxu0
    %v1057 = vadd.f32 0.0, %v1056
    %v1058 = vpop.f32.mrb[0].mxu0
    %1059 = vmatprep.mubr.bf16.mxu0 0
    %1060 = vmatmul.mubr.bf16.gmra.mrb[0].mxu0 %v293
    %v1061 = vpop.f32.mrb[0].mxu0
    %v1062 = vadd.f32 0.0, %v1061
    %v1063 = vpop.f32.mrb[0].mxu0
    %v1064 = vpop.f32.mrb[0].mxu0
    %v1065 = vadd.f32 0.0, %v1064
    %v1066 = vpop.f32.mrb[0].mxu0
    %1067 = vmatprep.mubr.bf16.mxu0 0
    %1068 = vmatmul.mubr.bf16.gmra.mrb[0].mxu0 %v294
    %v1069 = vpop.f32.mrb[0].mxu0
    %v1070 = vadd.f32 0.0, %v1069
    %v1071 = vpop.f32.mrb[0].mxu0
    %v1072 = vpop.f32.mrb[0].mxu0
    %v1073 = vadd.f32 0.0, %v1072
    %v1074 = vpop.f32.mrb[0].mxu0
    %1075 = vmatprep.mubr.bf16.mxu0 0
    %1076 = vmatmul.mubr.bf16.gmra.mrb[0].mxu0 %v295
    %v1077 = vpop.f32.mrb[0].mxu0
    %v1078 = vadd.f32 0.0, %v1077
    %v1079 = vpop.f32.mrb[0].mxu0
    %v1080 = vpop.f32.mrb[0].mxu0
    %v1081 = vadd.f32 0.0, %v1080
    %v1082 = vpop.f32.mrb[0].mxu0
    %1083 = vmatprep.mubr.bf16.mxu0 0
    %1084 = vmatmul.mubr.bf16.gmra.mrb[0].mxu0 %v296
    %v1085 = vpop.f32.mrb[0].mxu0
    %v1086 = vadd.f32 0.0, %v1085
    %v1087 = vpop.f32.mrb[0].mxu0
    %v1088 = vpop.f32.mrb[0].mxu0
    %v1089 = vadd.f32 0.0, %v1088
    %v1090 = vpop.f32.mrb[0].mxu0
    %1091 = vdwg.mxu0
    %v1092 = vmul.f32 %v1030, %v156
    %v1093 = vmul.f32 %v1033, %v161
    %v1094 = vmul.f32 %v1038, %v166
    %v1095 = vmul.f32 %v1041, %v171
    %v1096 = vmul.f32 %v1046, %v176
    %v1097 = vmul.f32 %v1049, %v181
    %v1098 = vmul.f32 %v1054, %v186
    %v1099 = vmul.f32 %v1057, %v191
    %v1100 = vmul.f32 %v1062, %v196
    %v1101 = vmul.f32 %v1065, %v201
    %v1102 = vmul.f32 %v1070, %v206
    %v1103 = vmul.f32 %v1073, %v211
    %v1104 = vmul.f32 %v1078, %v216
    %v1105 = vmul.f32 %v1081, %v221
    %v1106 = vmul.f32 %v1086, %v226
    %v1107 = vmul.f32 %v1089, %v231
    %v1108 = vld [vmem:[#allocation8] sm:$0xff]
    %v1109 = vld [vmem:[#allocation8 + $0x8] sm:$0xff]
    %v1110 = vld [vmem:[#allocation8 + $0x10] sm:$0xff]
    %v1111 = vld [vmem:[#allocation8 + $0x18] sm:$0xff]
    %v1112 = vld [vmem:[#allocation8 + $0x20] sm:$0xff]
    %v1113 = vld [vmem:[#allocation8 + $0x28] sm:$0xff]
    %v1114 = vld [vmem:[#allocation8 + $0x30] sm:$0xff]
    %v1115 = vld [vmem:[#allocation8 + $0x38] sm:$0xff]
    %v1116 = vld [vmem:[#allocation8 + $0x40] sm:$0xff]
    %v1117 = vld [vmem:[#allocation8 + $0x48] sm:$0xff]
    %v1118 = vld [vmem:[#allocation8 + $0x50] sm:$0xff]
    %v1119 = vld [vmem:[#allocation8 + $0x58] sm:$0xff]
    %v1120 = vld [vmem:[#allocation8 + $0x60] sm:$0xff]
    %v1121 = vld [vmem:[#allocation8 + $0x68] sm:$0xff]
    %v1122 = vld [vmem:[#allocation8 + $0x70] sm:$0xff]
    %v1123 = vld [vmem:[#allocation8 + $0x78] sm:$0xff]
    %v1124 = vld [vmem:[%s8] sm:$0x1]
    %v1126 = vlaneseq
    %v1127 = vshrl.u32 %v1126, 7
    %v1128 = vsub.s32 0, %v1127
    %v1129 = vrot.slane %v1124, %v1128
    %1131 = vmatprep.subr.mxu0 0.0
    %1132 = vmatpush1.msra.mxu0 %v1108
    %1133 = vmatprep.subr.mxu0 0.0
    %1134 = vmatpush1.msra.mxu0 %v1109
    %1135 = vmatprep.subr.mxu0 0.0
    %1136 = vmatpush1.msra.mxu0 %v1110
    %1137 = vmatprep.subr.mxu0 0.0
    %1138 = vmatpush1.msra.mxu0 %v1111
    %1139 = vmatprep.subr.mxu0 0.0
    %1140 = vmatpush1.msra.mxu0 %v1112
    %1141 = vmatprep.subr.mxu0 0.0
    %1142 = vmatpush1.msra.mxu0 %v1113
    %1143 = vmatprep.subr.mxu0 0.0
    %1144 = vmatpush1.msra.mxu0 %v1114
    %1145 = vmatprep.subr.mxu0 0.0
    %1146 = vmatpush1.msra.mxu0 %v1115
    %1147 = vmatprep.subr.mxu0 0.0
    %1148 = vmatpush1.msra.mxu0 %v1116
    %1149 = vmatprep.subr.mxu0 0.0
    %1150 = vmatpush1.msra.mxu0 %v1117
    %1151 = vmatprep.subr.mxu0 0.0
    %1152 = vmatpush1.msra.mxu0 %v1118
    %1153 = vmatprep.subr.mxu0 0.0
    %1154 = vmatpush1.msra.mxu0 %v1119
    %1155 = vmatprep.subr.mxu0 0.0
    %1156 = vmatpush1.msra.mxu0 %v1120
    %1157 = vmatprep.subr.mxu0 0.0
    %1158 = vmatpush1.msra.mxu0 %v1121
    %1159 = vmatprep.subr.mxu0 0.0
    %1160 = vmatpush1.msra.mxu0 %v1122
    %1161 = vmatprep.subr.mxu0 0.0
    %1162 = vmatpush1.msra.mxu0 %v1123
    %1163 = vmatprep.subr.mxu0 0.0
    %1164 = vmatpush1.msra.mxu0 0.0
    %1165 = vmatprep.subr.mxu0 0.0
    %1166 = vmatpush1.msra.mxu0 0.0
    %1167 = vmatprep.subr.mxu0 0.0
    %1168 = vmatpush1.msra.mxu0 0.0
    %1169 = vmatprep.subr.mxu0 0.0
    %1170 = vmatpush1.msra.mxu0 0.0
    %1171 = vmatprep.subr.mxu0 0.0
    %1172 = vmatpush1.msra.mxu0 0.0
    %1173 = vmatprep.subr.mxu0 0.0
    %1174 = vmatpush1.msra.mxu0 0.0
    %1175 = vmatprep.subr.mxu0 0.0
    %1176 = vmatpush1.msra.mxu0 0.0
    %1177 = vmatprep.subr.mxu0 0.0
    %1178 = vmatpush1.msra.mxu0 0.0
    %1179 = vmatprep.subr.mxu0 0.0
    %1180 = vmatpush1.msra.mxu0 0.0
    %1181 = vmatprep.subr.mxu0 0.0
    %1182 = vmatpush1.msra.mxu0 0.0
    %1183 = vmatprep.subr.mxu0 0.0
    %1184 = vmatpush1.msra.mxu0 0.0
    %1185 = vmatprep.subr.mxu0 0.0
    %1186 = vmatpush1.msra.mxu0 0.0
    %1187 = vmatprep.subr.mxu0 0.0
    %1188 = vmatpush1.msra.mxu0 0.0
    %1189 = vmatprep.subr.mxu0 0.0
    %1190 = vmatpush1.msra.mxu0 0.0
    %1191 = vmatprep.subr.mxu0 0.0
    %1192 = vmatpush1.msra.mxu0 0.0
    %1193 = vmatprep.subr.mxu0 0.0
    %1194 = vmatpush1.msra.mxu0 0.0
    %1195 = vmatprep.mubr.f32.mxu0 0.0
    %1196 = vmatmul.mubr.f32.gmra.mrb[0].mxu0 %v1092
    %v1197 = vpop.f32.mrb[0].mxu0
    %v1198 = vadd.f32 %v1129, %v1197
    %v1199 = vpop.f32.mrb[0].mxu0
    %1200 = vmatprep.mubr.f32.mxu0 0.0
    %1201 = vmatmul.mubr.f32.gmra.mrb[0].mxu0 %v1093
    %v1202 = vpop.f32.mrb[0].mxu0
    %v1203 = vadd.f32 %v1129, %v1202
    %v1204 = vpop.f32.mrb[0].mxu0
    %1205 = vmatprep.mubr.f32.mxu0 0.0
    %1206 = vmatmul.mubr.f32.gmra.mrb[0].mxu0 %v1094
    %v1207 = vpop.f32.mrb[0].mxu0
    %v1208 = vadd.f32 %v1129, %v1207
    %v1209 = vpop.f32.mrb[0].mxu0
    %1210 = vmatprep.mubr.f32.mxu0 0.0
    %1211 = vmatmul.mubr.f32.gmra.mrb[0].mxu0 %v1095
    %v1212 = vpop.f32.mrb[0].mxu0
    %v1213 = vadd.f32 %v1129, %v1212
    %v1214 = vpop.f32.mrb[0].mxu0
    %1215 = vmatprep.mubr.f32.mxu0 0.0
    %1216 = vmatmul.mubr.f32.gmra.mrb[0].mxu0 %v1096
    %v1217 = vpop.f32.mrb[0].mxu0
    %v1218 = vadd.f32 %v1129, %v1217
    %v1219 = vpop.f32.mrb[0].mxu0
    %1220 = vmatprep.mubr.f32.mxu0 0.0
    %1221 = vmatmul.mubr.f32.gmra.mrb[0].mxu0 %v1097
    %v1222 = vpop.f32.mrb[0].mxu0
    %v1223 = vadd.f32 %v1129, %v1222
    %v1224 = vpop.f32.mrb[0].mxu0
    %1225 = vmatprep.mubr.f32.mxu0 0.0
    %1226 = vmatmul.mubr.f32.gmra.mrb[0].mxu0 %v1098
    %v1227 = vpop.f32.mrb[0].mxu0
    %v1228 = vadd.f32 %v1129, %v1227
    %v1229 = vpop.f32.mrb[0].mxu0
    %1230 = vmatprep.mubr.f32.mxu0 0.0
    %1231 = vmatmul.mubr.f32.gmra.mrb[0].mxu0 %v1099
    %v1232 = vpop.f32.mrb[0].mxu0
    %v1233 = vadd.f32 %v1129, %v1232
    %v1234 = vpop.f32.mrb[0].mxu0
    %1235 = vmatprep.mubr.f32.mxu0 0.0
    %1236 = vmatmul.mubr.f32.gmra.mrb[0].mxu0 %v1100
    %v1237 = vpop.f32.mrb[0].mxu0
    %v1238 = vadd.f32 %v1129, %v1237
    %v1239 = vpop.f32.mrb[0].mxu0
    %1240 = vmatprep.mubr.f32.mxu0 0.0
    %1241 = vmatmul.mubr.f32.gmra.mrb[0].mxu0 %v1101
    %v1242 = vpop.f32.mrb[0].mxu0
    %v1243 = vadd.f32 %v1129, %v1242
    %v1244 = vpop.f32.mrb[0].mxu0
    %1245 = vmatprep.mubr.f32.mxu0 0.0
    %1246 = vmatmul.mubr.f32.gmra.mrb[0].mxu0 %v1102
    %v1247 = vpop.f32.mrb[0].mxu0
    %v1248 = vadd.f32 %v1129, %v1247
    %v1249 = vpop.f32.mrb[0].mxu0
    %1250 = vmatprep.mubr.f32.mxu0 0.0
    %1251 = vmatmul.mubr.f32.gmra.mrb[0].mxu0 %v1103
    %v1252 = vpop.f32.mrb[0].mxu0
    %v1253 = vadd.f32 %v1129, %v1252
    %v1254 = vpop.f32.mrb[0].mxu0
    %1255 = vmatprep.mubr.f32.mxu0 0.0
    %1256 = vmatmul.mubr.f32.gmra.mrb[0].mxu0 %v1104
    %v1257 = vpop.f32.mrb[0].mxu0
    %v1258 = vadd.f32 %v1129, %v1257
    %v1259 = vpop.f32.mrb[0].mxu0
    %1260 = vmatprep.mubr.f32.mxu0 0.0
    %1261 = vmatmul.mubr.f32.gmra.mrb[0].mxu0 %v1105
    %v1262 = vpop.f32.mrb[0].mxu0
    %v1263 = vadd.f32 %v1129, %v1262
    %v1264 = vpop.f32.mrb[0].mxu0
    %1265 = vmatprep.mubr.f32.mxu0 0.0
    %1266 = vmatmul.mubr.f32.gmra.mrb[0].mxu0 %v1106
    %v1267 = vpop.f32.mrb[0].mxu0
    %v1268 = vadd.f32 %v1129, %v1267
    %v1269 = vpop.f32.mrb[0].mxu0
    %1270 = vmatprep.mubr.f32.mxu0 0.0
    %1271 = vmatmul.mubr.f32.gmra.mrb[0].mxu0 %v1107
    %v1272 = vpop.f32.mrb[0].mxu0
    %v1273 = vadd.f32 %v1129, %v1272
    %v1274 = vpop.f32.mrb[0].mxu0
    %1275 = vdwg.mxu0
    %1276 = vst [vmem:[#allocation10] sm:$0xff] %v1198
    %1277 = vst [vmem:[#allocation10 + $0x8] sm:$0xff] %v1203
    %1278 = vst [vmem:[#allocation10 + $0x10] sm:$0xff] %v1208
    %1279 = vst [vmem:[#allocation10 + $0x18] sm:$0xff] %v1213
    %1280 = vst [vmem:[#allocation10 + $0x20] sm:$0xff] %v1218
    %1281 = vst [vmem:[#allocation10 + $0x28] sm:$0xff] %v1223
    %1282 = vst [vmem:[#allocation10 + $0x30] sm:$0xff] %v1228
    %1283 = vst [vmem:[#allocation10 + $0x38] sm:$0xff] %v1233
    %1284 = vst [vmem:[#allocation10 + $0x40] sm:$0xff] %v1238
    %1285 = vst [vmem:[#allocation10 + $0x48] sm:$0xff] %v1243
    %1286 = vst [vmem:[#allocation10 + $0x50] sm:$0xff] %v1248
    %1287 = vst [vmem:[#allocation10 + $0x58] sm:$0xff] %v1253
    %1288 = vst [vmem:[#allocation10 + $0x60] sm:$0xff] %v1258
    %1289 = vst [vmem:[#allocation10 + $0x68] sm:$0xff] %v1263
    %1290 = vst [vmem:[#allocation10 + $0x70] sm:$0xff] %v1268
    %1291 = vst [vmem:[#allocation10 + $0x78] sm:$0xff] %v1273
    // Predicated region
    $region54: #{tpu_custom_call.1} parent=1 // pred_check
      _
    $region55: #{tpu_custom_call.1} parent=1 // pred_check_branch
      %1293 = sbr.rel (0) target = $region57
    $region56: #{tpu_custom_call.1} parent=1 // pred_region
      %s1295 = ssub.s32 2048, 2048
      %1296 = vsyncadd [#allocation4], %s1295
      %s1297 = sshll.u32 [#allocation10], 4
      %s1298 = int_to_ptr.vmem [resolvable:$true] %s1297
      %1303 = dma.vmem_to_hbm [thread:$0]  %s1298, 2048, %s9, [#allocation4], 128, 128, 8
    $region57: #{tpu_custom_call.1} parent=1 // pred_fallthru
      _
    // Predicated region
    $region58: #{tpu_custom_call.1} parent=1 // pred_check
      _
    $region59: #{tpu_custom_call.1} parent=1 // pred_check_branch
      %1305 = sbr.rel (0) target = $region61
    $region60: #{tpu_custom_call.1} parent=1 // pred_region
      %1306 = dma.done [#allocation4], 2048
    $region61: #{tpu_custom_call.1} parent=1 // pred_fallthru
      _
    %1307 = vsyncpa [#allocation3], 1
    %1308 = vsyncpa [#allocation6], 1
    %1309 = vsyncpa [#allocation9], 1
    %1310 = vsyncpa [#allocation4], 1

</llo_original>
